<compile_context>
chip_gen: v5e
topology: v5e:2x2
jax: 0.10.0
libtpu: 0.0.40
codegen_flags: <defaults>
</compile_context>

<pallas_src>
import functools

import jax
import jax.numpy as jnp
from jax import lax
from jax.experimental import pallas as pl
from jax.experimental.pallas import tpu as pltpu


# --------------------------------------------------------------------------- #
# Kernel
# --------------------------------------------------------------------------- #
def _mha_kernel(q_ref, k_ref, wq_ref, wkv_ref, o_ref, *,
                num_heads, t_k_valid, matmul_dtype):
    # q_ref:   [B, Tq_pad, query_dim]     k_ref:  [B, Tk_pad, key_dim]
    # wq_ref:  [query_dim, U]  (pre-scaled by 1/sqrt(key_dim) in the wrapper)
    # wkv_ref: [key_dim, 2U]              o_ref:  [B, Tq_pad, U]
    B, Tq, Dq = q_ref.shape
    _, Tk, Dk = k_ref.shape
    U = wq_ref.shape[1]
    d_head = U // num_heads

    def cast(x):
        return x if matmul_dtype is None else x.astype(matmul_dtype)

    # ---- fused projections on the flattened batch block (MXU-shaped rows) ----
    q2 = cast(q_ref[...].reshape(B * Tq, Dq))   # layout-trivial: Tq % 8 == 0
    k2 = cast(k_ref[...].reshape(B * Tk, Dk))   # layout-trivial: Tk % 8 == 0
    # Q already carries the 1/sqrt(key_dim) softmax scale (folded into wq).
    Q = jnp.dot(q2, cast(wq_ref[...]), preferred_element_type=jnp.float32)    # [B*Tq, U]
    KV = jnp.dot(k2, cast(wkv_ref[...]), preferred_element_type=jnp.float32)  # [B*Tk, 2U]

    Q3 = Q.reshape(B, Tq, U)
    KV3 = KV.reshape(B, Tk, 2 * U)

    # ---- additive key-padding bias, built once from a tiny [1, Tk] iota ------
    if t_k_valid != Tk:
        kbias = jnp.where(
            lax.broadcasted_iota(jnp.int32, (1, Tk), 1) < t_k_valid,
            0.0, -1e30).astype(jnp.float32)     # stays f32: -1e30 is mask-safe
    else:
        kbias = None

    # ---- per-head attention: static lane slices + single-batch-dim einsums ---
    head_outs = []
    for h in range(num_heads):
        lo = h * d_head
        qh = cast(Q3[:, :, lo:lo + d_head])              # [B, Tq, d]
        kh = cast(KV3[:, :, lo:lo + d_head])             # [B, Tk, d]
        vh = cast(KV3[:, :, U + lo:U + lo + d_head])     # [B, Tk, d]

        s = jnp.einsum('bqd,bkd->bqk', qh, kh,
                       preferred_element_type=jnp.float32)       # [B, Tq, Tk] f32
        if kbias is not None:
            s = s + kbias                                        # one VPU add

        s = s - jnp.max(s, axis=-1, keepdims=True)
        p = jnp.exp(s)
        denom = jnp.sum(p, axis=-1, keepdims=True)
        p = p * pl.reciprocal(denom, approx=True)                # EUP slot, ~free

        head_outs.append(
            jnp.einsum('bqk,bkd->bqd', cast(p), vh,
                       preferred_element_type=jnp.float32))      # [B, Tq, d]

    # Heads re-assembled along the feature axis; single lane-dense store.
    out = jnp.concatenate(head_outs, axis=-1)                    # [B, Tq, U]
    o_ref[...] = out.astype(o_ref.dtype)

    # TODO(synk): for large T_k, stream K/V over an innermost 'arbitrary' grid
    # axis with online-softmax (flash-style) m/l/acc accumulators in VMEM scratch
    # instead of materializing the full per-head scores.


# --------------------------------------------------------------------------- #
# Sizing helpers
# --------------------------------------------------------------------------- #
def _round_up(x, m):
    return (x + m - 1) // m * m


def _tpu_info():
    try:
        return pltpu.get_tpu_info()
    except Exception:
        return None


def _vmem_capacity_bytes():
    info = _tpu_info()
    if info is not None:
        v = getattr(info, "vmem_capacity_bytes", None)
        if isinstance(v, int) and v > 0:
            return v
    return 64 * 2**20   # conservative default: v7x per-TensorCore VMEM


def _num_tensorcores():
    info = _tpu_info()
    if info is not None:
        for attr in ("num_cores", "core_count", "tensorcores_per_chip",
                     "num_tensorcores"):
            v = getattr(info, attr, None)
            if isinstance(v, int) and v > 0:
                return v
    return 1            # v5e / v6e have a single TensorCore


def _vmem_estimate(bb, t_q, t_k, dq, dk, u, num_heads, itemsize=4):
    """Rough per-grid-step VMEM footprint (bytes) for batch_block=bb."""
    d = u // num_heads
    blocks = 2 * (bb * t_q * dq + bb * t_k * dk + bb * t_q * u) * itemsize  # dbl-buffered q/k/out
    weights = (dq * u + dk * 2 * u) * itemsize                               # single-buffered
    inter = (bb * t_q * u + bb * t_k * 2 * u          # Q, KV slabs
             + 2 * bb * t_q * t_k                     # scores + probs (one head live)
             + bb * (t_q + 2 * t_k) * d               # per-head q/k/v slices
             + 2 * bb * t_q * u) * itemsize           # head outputs + assembled out
    return int((blocks + weights + inter) * 1.6)      # headroom for regalloc/copies


def _pick_batch_block(n, t_q_pad, t_k_pad, dq, dk, u, num_heads,
                      vmem_budget, num_cores):
    divisors = [b for b in range(1, n + 1) if n % b == 0]
    fits = [b for b in divisors
            if _vmem_estimate(b, t_q_pad, t_k_pad, dq, dk, u, num_heads)
            <= vmem_budget]
    if not fits:
        fits = [1]
    # Target ~256 flattened projection rows: fills the 2x256 MXU on v6e/v7x and
    # is at worst two passes on v5e's 128-wide MXU, while amortizing the
    # ~0.35us per-grid-step overhead.
    row_ok = [b for b in fits if b * t_q_pad <= 256] or [min(fits)]
    if num_cores >= 2:
        # Leave at least one grid step per TensorCore (only pays on v7x).
        multi = [b for b in row_ok if n // b >= num_cores]
        if multi:
            return max(multi)
    return max(row_ok)


# --------------------------------------------------------------------------- #
# Wrapper
# --------------------------------------------------------------------------- #
def multi_head_attention(query, key, w_query, w_key, w_value, *,
                         num_heads, key_dim, w_kv=None, batch_block=None,
                         matmul_dtype=jnp.bfloat16):
    """query: [N, T_q, query_dim], key: [N, T_k, key_dim].
    w_*: [in_features, num_units] (already transposed vs torch's [out, in]).
    w_kv: optional precomputed jnp.concatenate([w_key, w_value], axis=1) to avoid
          re-concatenating the KV weight on every call.
    matmul_dtype: dtype for MXU operands (f32 accumulation); None keeps f32."""
    N, T_q, query_dim = query.shape
    _, T_k, kd = key.shape
    num_units = w_query.shape[1]
    assert kd == key_dim
    assert num_units % num_heads == 0

    # Pad time dims so in-kernel reshapes are layout-trivial.  T_k is the lane
    # dim of scores/probs and the PV contraction dim, so for larger sequences
    # pad it all the way to a lane multiple (mask handles the extra columns).
    t_q_pad = _round_up(T_q, 8)
    t_k_pad = _round_up(T_k, 128) if T_k > 64 else _round_up(T_k, 8)

    num_cores = _num_tensorcores()
    vmem_budget = int(_vmem_capacity_bytes() * 0.7)
    if batch_block is None:
        batch_block = _pick_batch_block(N, t_q_pad, t_k_pad, query_dim, kd,
                                        num_units, num_heads, vmem_budget,
                                        num_cores)
    assert N % batch_block == 0, "batch_block must divide N"
    grid = (N // batch_block,)

    est = _vmem_estimate(batch_block, t_q_pad, t_k_pad, query_dim, kd,
                         num_units, num_heads)
    vmem_limit = int(min(max(est, 32 * 2**20), int(_vmem_capacity_bytes() * 0.9)))

    if t_q_pad != T_q:
        query = jnp.pad(query, ((0, 0), (0, t_q_pad - T_q), (0, 0)))
    if t_k_pad != T_k:
        key = jnp.pad(key, ((0, 0), (0, t_k_pad - T_k), (0, 0)))

    # Fold the softmax scale into W_query: the module scales scores by
    # 1/sqrt(key_dim) (FULL key feature dim, not 1/sqrt(d_head)) -- intentional.
    w_q_scaled = w_query * (1.0 / (key_dim ** 0.5))
    if w_kv is None:
        w_kv = jnp.concatenate([w_key, w_value], axis=1)   # [key_dim, 2U]

    kernel = functools.partial(_mha_kernel, num_heads=num_heads,
                               t_k_valid=T_k, matmul_dtype=matmul_dtype)

    def _call(single_buffer_weights):
        def wspec(shape):
            kwargs = {}
            if single_buffer_weights:
                # Constant block index across the grid -> one VMEM copy suffices.
                kwargs["pipeline_mode"] = pl.Buffered(1)
            return pl.BlockSpec(shape, lambda n: (0, 0), **kwargs)

        return pl.pallas_call(
            kernel,
            out_shape=jax.ShapeDtypeStruct((N, t_q_pad, num_units), query.dtype),
            grid_spec=pl.GridSpec(
                grid=grid,
                in_specs=[
                    pl.BlockSpec((batch_block, t_q_pad, query_dim),
                                 lambda n: (n, 0, 0)),
                    pl.BlockSpec((batch_block, t_k_pad, kd),
                                 lambda n: (n, 0, 0)),
                    wspec((query_dim, num_units)),
                    wspec((kd, 2 * num_units)),
                ],
                out_specs=pl.BlockSpec((batch_block, t_q_pad, num_units),
                                       lambda n: (n, 0, 0)),
            ),
            compiler_params=pltpu.CompilerParams(
                dimension_semantics=("parallel",),
                vmem_limit_bytes=vmem_limit,
            ),
        )(query, key, w_q_scaled, w_kv)

    try:
        out = _call(True)
    except Exception:
        # Fall back to default double-buffered weights if single-buffering is
        # not supported by this Pallas version.
        out = _call(False)

    return out[:, :T_q, :] if t_q_pad != T_q else out


# --------------------------------------------------------------------------- #
# Pure-JAX reference (mirrors the PyTorch forward exactly)
# --------------------------------------------------------------------------- #
def _reference(query, key, w_query, w_key, w_value, *, num_heads, key_dim):
    Q = query @ w_query            # [N, T_q, U]
    K = key @ w_key                # [N, T_k, U]
    V = key @ w_value              # [N, T_k, U]
    Qh = jnp.stack(jnp.split(Q, num_heads, axis=2), axis=0)
    Kh = jnp.stack(jnp.split(K, num_heads, axis=2), axis=0)
    Vh = jnp.stack(jnp.split(V, num_heads, axis=2), axis=0)
    scores = jnp.einsum('hnqd,hnkd->hnqk', Qh, Kh) / (key_dim ** 0.5)
    scores = jax.nn.softmax(scores, axis=3)
    out = jnp.einsum('hnqk,hnkd->hnqd', scores, Vh)            # [h, N, T_q, d]
    out = jnp.concatenate(jnp.split(out, num_heads, axis=0), axis=3)[0]
    return out


if __name__ == "__main__":
    # Small shapes consistent with the module's forward.
    N, T_q, T_k = 4, 8, 6
    query_dim, key_dim = 16, 12
    num_units, num_heads = 32, 4

    key0 = jax.random.PRNGKey(0)
    kq, kk, kwq, kwk, kwv = jax.random.split(key0, 5)

    query = jax.random.normal(kq, (N, T_q, query_dim), dtype=jnp.float32)
    key = jax.random.normal(kk, (N, T_k, key_dim), dtype=jnp.float32)

    # Deterministic Linear weights (bias=False), stored as [in, out] so the
    # kernel computes x @ W directly (equivalent to torch's x @ weight.T).
    def init_linear(k, fan_in, fan_out):
        bound = 1.0 / (fan_in ** 0.5)
        return jax.random.uniform(k, (fan_in, fan_out), jnp.float32, -bound, bound)

    w_query = init_linear(kwq, query_dim, num_units)
    w_key = init_linear(kwk, key_dim, num_units)
    w_value = init_linear(kwv, key_dim, num_units)

    ref = _reference(query, key, w_query, w_key, w_value,
                     num_heads=num_heads, key_dim=key_dim)

    # f32 MXU path (exact up to the approx-reciprocal softmax normalization).
    out_f32 = multi_head_attention(query, key, w_query, w_key, w_value,
                                   num_heads=num_heads, key_dim=key_dim,
                                   matmul_dtype=None)
    out_f32 = jax.block_until_ready(out_f32)
    assert out_f32.shape == (N, T_q, num_units)
    assert jnp.allclose(out_f32, ref, atol=2e-2, rtol=2e-2), "f32 mismatch vs reference"

    # Default bf16 MXU-operand path (f32 accumulation, f32 softmax).
    out_bf16 = multi_head_attention(query, key, w_query, w_key, w_value,
                                    num_heads=num_heads, key_dim=key_dim)
    out_bf16 = jax.block_until_ready(out_bf16)
    assert out_bf16.shape == (N, T_q, num_units)
    assert jnp.allclose(out_bf16, ref, atol=6e-2, rtol=6e-2), "bf16 mismatch vs reference"

    print("KERNEL_OK")
</pallas_src>

<mosaic_0001>
module attributes {stable_mosaic.version = 11 : i64} {
  func.func @_mha_kernel(%arg0: i32, %arg1: memref<4x8x16xf32, #tpu.memory_space<vmem>>, %arg2: memref<4x8x12xf32, #tpu.memory_space<vmem>>, %arg3: memref<16x32xf32, #tpu.memory_space<vmem>>, %arg4: memref<12x64xf32, #tpu.memory_space<vmem>>, %arg5: memref<4x8x32xf32, #tpu.memory_space<vmem>>) attributes {dimension_semantics = [#tpu.dimension_semantics<parallel>], iteration_bounds = array<i64: 1>, scalar_prefetch = 0 : i64, scratch_operands = 0 : i64, tpu.core_type = #tpu.core_type<tc>, window_params = [{transform_indices = @transform_0, window_bounds = array<i64: 4, 8, 16>}, {transform_indices = @transform_1, window_bounds = array<i64: 4, 8, 12>}, {pipeline_mode = #tpu.pipeline_mode<synchronous>, transform_indices = @transform_2, window_bounds = array<i64: 16, 32>}, {pipeline_mode = #tpu.pipeline_mode<synchronous>, transform_indices = @transform_3, window_bounds = array<i64: 12, 64>}, {transform_indices = @transform_4, window_bounds = array<i64: 4, 8, 32>}]} {
    %c0 = arith.constant 0 : index
    %c0_0 = arith.constant 0 : index
    %c0_1 = arith.constant 0 : index
    %0 = vector.load %arg1[%c0, %c0_0, %c0_1] : memref<4x8x16xf32, #tpu.memory_space<vmem>>, vector<4x8x16xf32>
    %1 = vector.shape_cast %0 : vector<4x8x16xf32> to vector<32x16xf32>
    %c0_2 = arith.constant 0 : index
    %c0_3 = arith.constant 0 : index
    %c0_4 = arith.constant 0 : index
    %2 = vector.load %arg2[%c0_2, %c0_3, %c0_4] : memref<4x8x12xf32, #tpu.memory_space<vmem>>, vector<4x8x12xf32>
    %3 = vector.shape_cast %2 : vector<4x8x12xf32> to vector<32x12xf32>
    %c0_5 = arith.constant 0 : index
    %c0_6 = arith.constant 0 : index
    %4 = vector.load %arg3[%c0_5, %c0_6] : memref<16x32xf32, #tpu.memory_space<vmem>>, vector<16x32xf32>
    %cst = arith.constant dense<0.000000e+00> : vector<32x32xf32>
    %5 = tpu.matmul %1, %4, %cst {dimension_numbers = #tpu.dot_dimension_numbers<[1], [0], [0], [1], [0, 0, 1, 1], [], []>} : vector<32x16xf32>, vector<16x32xf32>, vector<32x32xf32> -> vector<32x32xf32>
    %c0_7 = arith.constant 0 : index
    %c0_8 = arith.constant 0 : index
    %6 = vector.load %arg4[%c0_7, %c0_8] : memref<12x64xf32, #tpu.memory_space<vmem>>, vector<12x64xf32>
    %cst_9 = arith.constant dense<0.000000e+00> : vector<32x64xf32>
    %7 = tpu.matmul %3, %6, %cst_9 {dimension_numbers = #tpu.dot_dimension_numbers<[1], [0], [0], [1], [0, 0, 1, 1], [], []>} : vector<32x12xf32>, vector<12x64xf32>, vector<32x64xf32> -> vector<32x64xf32>
    %8 = vector.shape_cast %5 : vector<32x32xf32> to vector<4x8x32xf32>
    %9 = vector.shape_cast %7 : vector<32x64xf32> to vector<4x8x64xf32>
    %10 = tpu.iota {dimensions = array<i32: 1>} : vector<1x8xi32>
    %c6_i32 = arith.constant 6 : i32
    %11 = vector.broadcast %c6_i32 : i32 to vector<1x8xi32>
    %12 = arith.cmpi slt, %10, %11 : vector<1x8xi32>
    %cst_10 = arith.constant 0.000000e+00 : f32
    %cst_11 = arith.constant -1.000000e+30 : f32
    %13 = vector.broadcast %cst_10 : f32 to vector<1x8xf32>
    %14 = vector.broadcast %cst_11 : f32 to vector<1x8xf32>
    %15 = arith.select %12, %13, %14 : vector<1x8xi1>, vector<1x8xf32>
    %16 = vector.extract_strided_slice %8 {offsets = [0, 0, 0], sizes = [4, 8, 8], strides = [1, 1, 1]} : vector<4x8x32xf32> to vector<4x8x8xf32>
    %17 = vector.extract_strided_slice %9 {offsets = [0, 0, 0], sizes = [4, 8, 8], strides = [1, 1, 1]} : vector<4x8x64xf32> to vector<4x8x8xf32>
    %18 = vector.extract_strided_slice %9 {offsets = [0, 0, 32], sizes = [4, 8, 8], strides = [1, 1, 1]} : vector<4x8x64xf32> to vector<4x8x8xf32>
    "tpu.trace_start"() <{level = 10 : i32, message = "bqd,bkd->bqk"}> : () -> ()
    %cst_12 = arith.constant dense<0.000000e+00> : vector<4x8x8xf32>
    %19 = tpu.matmul %16, %17, %cst_12 {dimension_numbers = #tpu.dot_dimension_numbers<[2], [2], [1], [1], [0, 0, 0, 1, 1, 1], [0], [0]>} : vector<4x8x8xf32>, vector<4x8x8xf32>, vector<4x8x8xf32> -> vector<4x8x8xf32>
    "tpu.trace_stop"() : () -> ()
    %20 = vector.shape_cast %15 : vector<1x8xf32> to vector<1x1x8xf32>
    %21 = vector.broadcast %20 : vector<1x1x8xf32> to vector<4x8x8xf32>
    %22 = arith.addf %19, %21 : vector<4x8x8xf32>
    %cst_13 = arith.constant dense<0xFF800000> : vector<4x8xf32>
    %23 = vector.multi_reduction <maximumf>, %22, %cst_13 [2] : vector<4x8x8xf32> to vector<4x8xf32>
    %24 = vector.shape_cast %23 : vector<4x8xf32> to vector<4x8x1xf32>
    %25 = vector.broadcast %24 : vector<4x8x1xf32> to vector<4x8x8xf32>
    %26 = arith.subf %22, %25 : vector<4x8x8xf32>
    %27 = math.exp %26 : vector<4x8x8xf32>
    %cst_14 = arith.constant dense<0.000000e+00> : vector<4x8xf32>
    %28 = vector.multi_reduction <add>, %27, %cst_14 [2] : vector<4x8x8xf32> to vector<4x8xf32>
    %29 = vector.shape_cast %28 : vector<4x8xf32> to vector<4x8x1xf32>
    %30 = tpu.reciprocal %29 {approx = true} : vector<4x8x1xf32> -> vector<4x8x1xf32>
    %31 = vector.broadcast %30 : vector<4x8x1xf32> to vector<4x8x8xf32>
    %32 = arith.mulf %27, %31 : vector<4x8x8xf32>
    "tpu.trace_start"() <{level = 10 : i32, message = "bqk,bkd->bqd"}> : () -> ()
    %cst_15 = arith.constant dense<0.000000e+00> : vector<4x8x8xf32>
    %33 = tpu.matmul %32, %18, %cst_15 {dimension_numbers = #tpu.dot_dimension_numbers<[2], [1], [1], [2], [0, 0, 0, 1, 1, 2], [0], [0]>} : vector<4x8x8xf32>, vector<4x8x8xf32>, vector<4x8x8xf32> -> vector<4x8x8xf32>
    "tpu.trace_stop"() : () -> ()
    %34 = vector.extract_strided_slice %8 {offsets = [0, 0, 8], sizes = [4, 8, 8], strides = [1, 1, 1]} : vector<4x8x32xf32> to vector<4x8x8xf32>
    %35 = vector.extract_strided_slice %9 {offsets = [0, 0, 8], sizes = [4, 8, 8], strides = [1, 1, 1]} : vector<4x8x64xf32> to vector<4x8x8xf32>
    %36 = vector.extract_strided_slice %9 {offsets = [0, 0, 40], sizes = [4, 8, 8], strides = [1, 1, 1]} : vector<4x8x64xf32> to vector<4x8x8xf32>
    "tpu.trace_start"() <{level = 10 : i32, message = "bqd,bkd->bqk"}> : () -> ()
    %cst_16 = arith.constant dense<0.000000e+00> : vector<4x8x8xf32>
    %37 = tpu.matmul %34, %35, %cst_16 {dimension_numbers = #tpu.dot_dimension_numbers<[2], [2], [1], [1], [0, 0, 0, 1, 1, 1], [0], [0]>} : vector<4x8x8xf32>, vector<4x8x8xf32>, vector<4x8x8xf32> -> vector<4x8x8xf32>
    "tpu.trace_stop"() : () -> ()
    %38 = vector.shape_cast %15 : vector<1x8xf32> to vector<1x1x8xf32>
    %39 = vector.broadcast %38 : vector<1x1x8xf32> to vector<4x8x8xf32>
    %40 = arith.addf %37, %39 : vector<4x8x8xf32>
    %cst_17 = arith.constant dense<0xFF800000> : vector<4x8xf32>
    %41 = vector.multi_reduction <maximumf>, %40, %cst_17 [2] : vector<4x8x8xf32> to vector<4x8xf32>
    %42 = vector.shape_cast %41 : vector<4x8xf32> to vector<4x8x1xf32>
    %43 = vector.broadcast %42 : vector<4x8x1xf32> to vector<4x8x8xf32>
    %44 = arith.subf %40, %43 : vector<4x8x8xf32>
    %45 = math.exp %44 : vector<4x8x8xf32>
    %cst_18 = arith.constant dense<0.000000e+00> : vector<4x8xf32>
    %46 = vector.multi_reduction <add>, %45, %cst_18 [2] : vector<4x8x8xf32> to vector<4x8xf32>
    %47 = vector.shape_cast %46 : vector<4x8xf32> to vector<4x8x1xf32>
    %48 = tpu.reciprocal %47 {approx = true} : vector<4x8x1xf32> -> vector<4x8x1xf32>
    %49 = vector.broadcast %48 : vector<4x8x1xf32> to vector<4x8x8xf32>
    %50 = arith.mulf %45, %49 : vector<4x8x8xf32>
    "tpu.trace_start"() <{level = 10 : i32, message = "bqk,bkd->bqd"}> : () -> ()
    %cst_19 = arith.constant dense<0.000000e+00> : vector<4x8x8xf32>
    %51 = tpu.matmul %50, %36, %cst_19 {dimension_numbers = #tpu.dot_dimension_numbers<[2], [1], [1], [2], [0, 0, 0, 1, 1, 2], [0], [0]>} : vector<4x8x8xf32>, vector<4x8x8xf32>, vector<4x8x8xf32> -> vector<4x8x8xf32>
    "tpu.trace_stop"() : () -> ()
    %52 = vector.extract_strided_slice %8 {offsets = [0, 0, 16], sizes = [4, 8, 8], strides = [1, 1, 1]} : vector<4x8x32xf32> to vector<4x8x8xf32>
    %53 = vector.extract_strided_slice %9 {offsets = [0, 0, 16], sizes = [4, 8, 8], strides = [1, 1, 1]} : vector<4x8x64xf32> to vector<4x8x8xf32>
    %54 = vector.extract_strided_slice %9 {offsets = [0, 0, 48], sizes = [4, 8, 8], strides = [1, 1, 1]} : vector<4x8x64xf32> to vector<4x8x8xf32>
    "tpu.trace_start"() <{level = 10 : i32, message = "bqd,bkd->bqk"}> : () -> ()
    %cst_20 = arith.constant dense<0.000000e+00> : vector<4x8x8xf32>
    %55 = tpu.matmul %52, %53, %cst_20 {dimension_numbers = #tpu.dot_dimension_numbers<[2], [2], [1], [1], [0, 0, 0, 1, 1, 1], [0], [0]>} : vector<4x8x8xf32>, vector<4x8x8xf32>, vector<4x8x8xf32> -> vector<4x8x8xf32>
    "tpu.trace_stop"() : () -> ()
    %56 = vector.shape_cast %15 : vector<1x8xf32> to vector<1x1x8xf32>
    %57 = vector.broadcast %56 : vector<1x1x8xf32> to vector<4x8x8xf32>
    %58 = arith.addf %55, %57 : vector<4x8x8xf32>
    %cst_21 = arith.constant dense<0xFF800000> : vector<4x8xf32>
    %59 = vector.multi_reduction <maximumf>, %58, %cst_21 [2] : vector<4x8x8xf32> to vector<4x8xf32>
    %60 = vector.shape_cast %59 : vector<4x8xf32> to vector<4x8x1xf32>
    %61 = vector.broadcast %60 : vector<4x8x1xf32> to vector<4x8x8xf32>
    %62 = arith.subf %58, %61 : vector<4x8x8xf32>
    %63 = math.exp %62 : vector<4x8x8xf32>
    %cst_22 = arith.constant dense<0.000000e+00> : vector<4x8xf32>
    %64 = vector.multi_reduction <add>, %63, %cst_22 [2] : vector<4x8x8xf32> to vector<4x8xf32>
    %65 = vector.shape_cast %64 : vector<4x8xf32> to vector<4x8x1xf32>
    %66 = tpu.reciprocal %65 {approx = true} : vector<4x8x1xf32> -> vector<4x8x1xf32>
    %67 = vector.broadcast %66 : vector<4x8x1xf32> to vector<4x8x8xf32>
    %68 = arith.mulf %63, %67 : vector<4x8x8xf32>
    "tpu.trace_start"() <{level = 10 : i32, message = "bqk,bkd->bqd"}> : () -> ()
    %cst_23 = arith.constant dense<0.000000e+00> : vector<4x8x8xf32>
    %69 = tpu.matmul %68, %54, %cst_23 {dimension_numbers = #tpu.dot_dimension_numbers<[2], [1], [1], [2], [0, 0, 0, 1, 1, 2], [0], [0]>} : vector<4x8x8xf32>, vector<4x8x8xf32>, vector<4x8x8xf32> -> vector<4x8x8xf32>
    "tpu.trace_stop"() : () -> ()
    %70 = vector.extract_strided_slice %8 {offsets = [0, 0, 24], sizes = [4, 8, 8], strides = [1, 1, 1]} : vector<4x8x32xf32> to vector<4x8x8xf32>
    %71 = vector.extract_strided_slice %9 {offsets = [0, 0, 24], sizes = [4, 8, 8], strides = [1, 1, 1]} : vector<4x8x64xf32> to vector<4x8x8xf32>
    %72 = vector.extract_strided_slice %9 {offsets = [0, 0, 56], sizes = [4, 8, 8], strides = [1, 1, 1]} : vector<4x8x64xf32> to vector<4x8x8xf32>
    "tpu.trace_start"() <{level = 10 : i32, message = "bqd,bkd->bqk"}> : () -> ()
    %cst_24 = arith.constant dense<0.000000e+00> : vector<4x8x8xf32>
    %73 = tpu.matmul %70, %71, %cst_24 {dimension_numbers = #tpu.dot_dimension_numbers<[2], [2], [1], [1], [0, 0, 0, 1, 1, 1], [0], [0]>} : vector<4x8x8xf32>, vector<4x8x8xf32>, vector<4x8x8xf32> -> vector<4x8x8xf32>
    "tpu.trace_stop"() : () -> ()
    %74 = vector.shape_cast %15 : vector<1x8xf32> to vector<1x1x8xf32>
    %75 = vector.broadcast %74 : vector<1x1x8xf32> to vector<4x8x8xf32>
    %76 = arith.addf %73, %75 : vector<4x8x8xf32>
    %cst_25 = arith.constant dense<0xFF800000> : vector<4x8xf32>
    %77 = vector.multi_reduction <maximumf>, %76, %cst_25 [2] : vector<4x8x8xf32> to vector<4x8xf32>
    %78 = vector.shape_cast %77 : vector<4x8xf32> to vector<4x8x1xf32>
    %79 = vector.broadcast %78 : vector<4x8x1xf32> to vector<4x8x8xf32>
    %80 = arith.subf %76, %79 : vector<4x8x8xf32>
    %81 = math.exp %80 : vector<4x8x8xf32>
    %cst_26 = arith.constant dense<0.000000e+00> : vector<4x8xf32>
    %82 = vector.multi_reduction <add>, %81, %cst_26 [2] : vector<4x8x8xf32> to vector<4x8xf32>
    %83 = vector.shape_cast %82 : vector<4x8xf32> to vector<4x8x1xf32>
    %84 = tpu.reciprocal %83 {approx = true} : vector<4x8x1xf32> -> vector<4x8x1xf32>
    %85 = vector.broadcast %84 : vector<4x8x1xf32> to vector<4x8x8xf32>
    %86 = arith.mulf %81, %85 : vector<4x8x8xf32>
    "tpu.trace_start"() <{level = 10 : i32, message = "bqk,bkd->bqd"}> : () -> ()
    %cst_27 = arith.constant dense<0.000000e+00> : vector<4x8x8xf32>
    %87 = tpu.matmul %86, %72, %cst_27 {dimension_numbers = #tpu.dot_dimension_numbers<[2], [1], [1], [2], [0, 0, 0, 1, 1, 2], [0], [0]>} : vector<4x8x8xf32>, vector<4x8x8xf32>, vector<4x8x8xf32> -> vector<4x8x8xf32>
    "tpu.trace_stop"() : () -> ()
    %88 = tpu.concatenate %33, %51, %69, %87 in 2 : vector<4x8x8xf32>, vector<4x8x8xf32>, vector<4x8x8xf32>, vector<4x8x8xf32> -> vector<4x8x32xf32>
    %c0_28 = arith.constant 0 : index
    %c0_29 = arith.constant 0 : index
    %c0_30 = arith.constant 0 : index
    %89 = vector.load %arg5[%c0_28, %c0_29, %c0_30] : memref<4x8x32xf32, #tpu.memory_space<vmem>>, vector<4x8x32xf32>
    tpu.vector_store %arg5[%c0_28, %c0_29, %c0_30], %88 {strides = array<i32>} : memref<4x8x32xf32, #tpu.memory_space<vmem>>, vector<4x8x32xf32>,
    return
  }
  func.func @transform_0(%arg0: i32) -> (i32, i32, i32) {
    %c0_i32 = arith.constant 0 : i32
    %c0_i32_0 = arith.constant 0 : i32
    %c0_i32_1 = arith.constant 0 : i32
    return %arg0, %c0_i32, %c0_i32_0 : i32, i32, i32
  }
  func.func @transform_1(%arg0: i32) -> (i32, i32, i32) {
    %c0_i32 = arith.constant 0 : i32
    %c0_i32_0 = arith.constant 0 : i32
    %c0_i32_1 = arith.constant 0 : i32
    return %arg0, %c0_i32, %c0_i32_0 : i32, i32, i32
  }
  func.func @transform_2(%arg0: i32) -> (i32, i32) {
    %c0_i32 = arith.constant 0 : i32
    %c0_i32_0 = arith.constant 0 : i32
    %c0_i32_1 = arith.constant 0 : i32
    return %c0_i32, %c0_i32_0 : i32, i32
  }
  func.func @transform_3(%arg0: i32) -> (i32, i32) {
    %c0_i32 = arith.constant 0 : i32
    %c0_i32_0 = arith.constant 0 : i32
    %c0_i32_1 = arith.constant 0 : i32
    return %c0_i32, %c0_i32_0 : i32, i32
  }
  func.func @transform_4(%arg0: i32) -> (i32, i32, i32) {
    %c0_i32 = arith.constant 0 : i32
    %c0_i32_0 = arith.constant 0 : i32
    %c0_i32_1 = arith.constant 0 : i32
    return %arg0, %c0_i32, %c0_i32_0 : i32, i32, i32
  }
}

module attributes {stable_mosaic.version = 11 : i64} {
  func.func @_mha_kernel(%arg0: i32, %arg1: memref<4x8x16xf32, #tpu.memory_space<vmem>>, %arg2: memref<4x8x12xf32, #tpu.memory_space<vmem>>, %arg3: memref<16x32xf32, #tpu.memory_space<vmem>>, %arg4: memref<12x64xf32, #tpu.memory_space<vmem>>, %arg5: memref<4x8x32xf32, #tpu.memory_space<vmem>>) attributes {dimension_semantics = [#tpu.dimension_semantics<parallel>], iteration_bounds = array<i64: 1>, scalar_prefetch = 0 : i64, scratch_operands = 0 : i64, tpu.core_type = #tpu.core_type<tc>, window_params = [{transform_indices = @transform_0, window_bounds = array<i64: 4, 8, 16>}, {transform_indices = @transform_1, window_bounds = array<i64: 4, 8, 12>}, {pipeline_mode = #tpu.pipeline_mode<synchronous>, transform_indices = @transform_2, window_bounds = array<i64: 16, 32>}, {pipeline_mode = #tpu.pipeline_mode<synchronous>, transform_indices = @transform_3, window_bounds = array<i64: 12, 64>}, {transform_indices = @transform_4, window_bounds = array<i64: 4, 8, 32>}]} {
    %c0 = arith.constant 0 : index
    %c0_0 = arith.constant 0 : index
    %c0_1 = arith.constant 0 : index
    %0 = vector.load %arg1[%c0, %c0_0, %c0_1] : memref<4x8x16xf32, #tpu.memory_space<vmem>>, vector<4x8x16xf32>
    %1 = vector.shape_cast %0 : vector<4x8x16xf32> to vector<32x16xf32>
    %c0_2 = arith.constant 0 : index
    %c0_3 = arith.constant 0 : index
    %c0_4 = arith.constant 0 : index
    %2 = vector.load %arg2[%c0_2, %c0_3, %c0_4] : memref<4x8x12xf32, #tpu.memory_space<vmem>>, vector<4x8x12xf32>
    %3 = vector.shape_cast %2 : vector<4x8x12xf32> to vector<32x12xf32>
    %c0_5 = arith.constant 0 : index
    %c0_6 = arith.constant 0 : index
    %4 = vector.load %arg3[%c0_5, %c0_6] : memref<16x32xf32, #tpu.memory_space<vmem>>, vector<16x32xf32>
    %cst = arith.constant dense<0.000000e+00> : vector<32x32xf32>
    %5 = tpu.matmul %1, %4, %cst {dimension_numbers = #tpu.dot_dimension_numbers<[1], [0], [0], [1], [0, 0, 1, 1], [], []>} : vector<32x16xf32>, vector<16x32xf32>, vector<32x32xf32> -> vector<32x32xf32>
    %c0_7 = arith.constant 0 : index
    %c0_8 = arith.constant 0 : index
    %6 = vector.load %arg4[%c0_7, %c0_8] : memref<12x64xf32, #tpu.memory_space<vmem>>, vector<12x64xf32>
    %cst_9 = arith.constant dense<0.000000e+00> : vector<32x64xf32>
    %7 = tpu.matmul %3, %6, %cst_9 {dimension_numbers = #tpu.dot_dimension_numbers<[1], [0], [0], [1], [0, 0, 1, 1], [], []>} : vector<32x12xf32>, vector<12x64xf32>, vector<32x64xf32> -> vector<32x64xf32>
    %8 = vector.shape_cast %5 : vector<32x32xf32> to vector<4x8x32xf32>
    %9 = vector.shape_cast %7 : vector<32x64xf32> to vector<4x8x64xf32>
    %10 = tpu.iota {dimensions = array<i32: 1>} : vector<1x8xi32>
    %c6_i32 = arith.constant 6 : i32
    %11 = vector.broadcast %c6_i32 : i32 to vector<1x8xi32>
    %12 = arith.cmpi slt, %10, %11 : vector<1x8xi32>
    %cst_10 = arith.constant 0.000000e+00 : f32
    %cst_11 = arith.constant -1.000000e+30 : f32
    %13 = vector.broadcast %cst_10 : f32 to vector<1x8xf32>
    %14 = vector.broadcast %cst_11 : f32 to vector<1x8xf32>
    %15 = arith.select %12, %13, %14 : vector<1x8xi1>, vector<1x8xf32>
    %16 = vector.extract_strided_slice %8 {offsets = [0, 0, 0], sizes = [4, 8, 8], strides = [1, 1, 1]} : vector<4x8x32xf32> to vector<4x8x8xf32>
    %17 = vector.extract_strided_slice %9 {offsets = [0, 0, 0], sizes = [4, 8, 8], strides = [1, 1, 1]} : vector<4x8x64xf32> to vector<4x8x8xf32>
    %18 = vector.extract_strided_slice %9 {offsets = [0, 0, 32], sizes = [4, 8, 8], strides = [1, 1, 1]} : vector<4x8x64xf32> to vector<4x8x8xf32>
    "tpu.trace_start"() <{level = 10 : i32, message = "bqd,bkd->bqk"}> : () -> ()
    %cst_12 = arith.constant dense<0.000000e+00> : vector<4x8x8xf32>
    %19 = tpu.matmul %16, %17, %cst_12 {dimension_numbers = #tpu.dot_dimension_numbers<[2], [2], [1], [1], [0, 0, 0, 1, 1, 1], [0], [0]>} : vector<4x8x8xf32>, vector<4x8x8xf32>, vector<4x8x8xf32> -> vector<4x8x8xf32>
    "tpu.trace_stop"() : () -> ()
    %20 = vector.shape_cast %15 : vector<1x8xf32> to vector<1x1x8xf32>
    %21 = vector.broadcast %20 : vector<1x1x8xf32> to vector<4x8x8xf32>
    %22 = arith.addf %19, %21 : vector<4x8x8xf32>
    %cst_13 = arith.constant dense<0xFF800000> : vector<4x8xf32>
    %23 = vector.multi_reduction <maximumf>, %22, %cst_13 [2] : vector<4x8x8xf32> to vector<4x8xf32>
    %24 = vector.shape_cast %23 : vector<4x8xf32> to vector<4x8x1xf32>
    %25 = vector.broadcast %24 : vector<4x8x1xf32> to vector<4x8x8xf32>
    %26 = arith.subf %22, %25 : vector<4x8x8xf32>
    %27 = math.exp %26 : vector<4x8x8xf32>
    %cst_14 = arith.constant dense<0.000000e+00> : vector<4x8xf32>
    %28 = vector.multi_reduction <add>, %27, %cst_14 [2] : vector<4x8x8xf32> to vector<4x8xf32>
    %29 = vector.shape_cast %28 : vector<4x8xf32> to vector<4x8x1xf32>
    %30 = tpu.reciprocal %29 {approx = true} : vector<4x8x1xf32> -> vector<4x8x1xf32>
    %31 = vector.broadcast %30 : vector<4x8x1xf32> to vector<4x8x8xf32>
    %32 = arith.mulf %27, %31 : vector<4x8x8xf32>
    "tpu.trace_start"() <{level = 10 : i32, message = "bqk,bkd->bqd"}> : () -> ()
    %cst_15 = arith.constant dense<0.000000e+00> : vector<4x8x8xf32>
    %33 = tpu.matmul %32, %18, %cst_15 {dimension_numbers = #tpu.dot_dimension_numbers<[2], [1], [1], [2], [0, 0, 0, 1, 1, 2], [0], [0]>} : vector<4x8x8xf32>, vector<4x8x8xf32>, vector<4x8x8xf32> -> vector<4x8x8xf32>
    "tpu.trace_stop"() : () -> ()
    %34 = vector.extract_strided_slice %8 {offsets = [0, 0, 8], sizes = [4, 8, 8], strides = [1, 1, 1]} : vector<4x8x32xf32> to vector<4x8x8xf32>
    %35 = vector.extract_strided_slice %9 {offsets = [0, 0, 8], sizes = [4, 8, 8], strides = [1, 1, 1]} : vector<4x8x64xf32> to vector<4x8x8xf32>
    %36 = vector.extract_strided_slice %9 {offsets = [0, 0, 40], sizes = [4, 8, 8], strides = [1, 1, 1]} : vector<4x8x64xf32> to vector<4x8x8xf32>
    "tpu.trace_start"() <{level = 10 : i32, message = "bqd,bkd->bqk"}> : () -> ()
    %cst_16 = arith.constant dense<0.000000e+00> : vector<4x8x8xf32>
    %37 = tpu.matmul %34, %35, %cst_16 {dimension_numbers = #tpu.dot_dimension_numbers<[2], [2], [1], [1], [0, 0, 0, 1, 1, 1], [0], [0]>} : vector<4x8x8xf32>, vector<4x8x8xf32>, vector<4x8x8xf32> -> vector<4x8x8xf32>
    "tpu.trace_stop"() : () -> ()
    %38 = vector.shape_cast %15 : vector<1x8xf32> to vector<1x1x8xf32>
    %39 = vector.broadcast %38 : vector<1x1x8xf32> to vector<4x8x8xf32>
    %40 = arith.addf %37, %39 : vector<4x8x8xf32>
    %cst_17 = arith.constant dense<0xFF800000> : vector<4x8xf32>
    %41 = vector.multi_reduction <maximumf>, %40, %cst_17 [2] : vector<4x8x8xf32> to vector<4x8xf32>
    %42 = vector.shape_cast %41 : vector<4x8xf32> to vector<4x8x1xf32>
    %43 = vector.broadcast %42 : vector<4x8x1xf32> to vector<4x8x8xf32>
    %44 = arith.subf %40, %43 : vector<4x8x8xf32>
    %45 = math.exp %44 : vector<4x8x8xf32>
    %cst_18 = arith.constant dense<0.000000e+00> : vector<4x8xf32>
    %46 = vector.multi_reduction <add>, %45, %cst_18 [2] : vector<4x8x8xf32> to vector<4x8xf32>
    %47 = vector.shape_cast %46 : vector<4x8xf32> to vector<4x8x1xf32>
    %48 = tpu.reciprocal %47 {approx = true} : vector<4x8x1xf32> -> vector<4x8x1xf32>
    %49 = vector.broadcast %48 : vector<4x8x1xf32> to vector<4x8x8xf32>
    %50 = arith.mulf %45, %49 : vector<4x8x8xf32>
    "tpu.trace_start"() <{level = 10 : i32, message = "bqk,bkd->bqd"}> : () -> ()
    %cst_19 = arith.constant dense<0.000000e+00> : vector<4x8x8xf32>
    %51 = tpu.matmul %50, %36, %cst_19 {dimension_numbers = #tpu.dot_dimension_numbers<[2], [1], [1], [2], [0, 0, 0, 1, 1, 2], [0], [0]>} : vector<4x8x8xf32>, vector<4x8x8xf32>, vector<4x8x8xf32> -> vector<4x8x8xf32>
    "tpu.trace_stop"() : () -> ()
    %52 = vector.extract_strided_slice %8 {offsets = [0, 0, 16], sizes = [4, 8, 8], strides = [1, 1, 1]} : vector<4x8x32xf32> to vector<4x8x8xf32>
    %53 = vector.extract_strided_slice %9 {offsets = [0, 0, 16], sizes = [4, 8, 8], strides = [1, 1, 1]} : vector<4x8x64xf32> to vector<4x8x8xf32>
    %54 = vector.extract_strided_slice %9 {offsets = [0, 0, 48], sizes = [4, 8, 8], strides = [1, 1, 1]} : vector<4x8x64xf32> to vector<4x8x8xf32>
    "tpu.trace_start"() <{level = 10 : i32, message = "bqd,bkd->bqk"}> : () -> ()
    %cst_20 = arith.constant dense<0.000000e+00> : vector<4x8x8xf32>
    %55 = tpu.matmul %52, %53, %cst_20 {dimension_numbers = #tpu.dot_dimension_numbers<[2], [2], [1], [1], [0, 0, 0, 1, 1, 1], [0], [0]>} : vector<4x8x8xf32>, vector<4x8x8xf32>, vector<4x8x8xf32> -> vector<4x8x8xf32>
    "tpu.trace_stop"() : () -> ()
    %56 = vector.shape_cast %15 : vector<1x8xf32> to vector<1x1x8xf32>
    %57 = vector.broadcast %56 : vector<1x1x8xf32> to vector<4x8x8xf32>
    %58 = arith.addf %55, %57 : vector<4x8x8xf32>
    %cst_21 = arith.constant dense<0xFF800000> : vector<4x8xf32>
    %59 = vector.multi_reduction <maximumf>, %58, %cst_21 [2] : vector<4x8x8xf32> to vector<4x8xf32>
    %60 = vector.shape_cast %59 : vector<4x8xf32> to vector<4x8x1xf32>
    %61 = vector.broadcast %60 : vector<4x8x1xf32> to vector<4x8x8xf32>
    %62 = arith.subf %58, %61 : vector<4x8x8xf32>
    %63 = math.exp %62 : vector<4x8x8xf32>
    %cst_22 = arith.constant dense<0.000000e+00> : vector<4x8xf32>
    %64 = vector.multi_reduction <add>, %63, %cst_22 [2] : vector<4x8x8xf32> to vector<4x8xf32>
    %65 = vector.shape_cast %64 : vector<4x8xf32> to vector<4x8x1xf32>
    %66 = tpu.reciprocal %65 {approx = true} : vector<4x8x1xf32> -> vector<4x8x1xf32>
    %67 = vector.broadcast %66 : vector<4x8x1xf32> to vector<4x8x8xf32>
    %68 = arith.mulf %63, %67 : vector<4x8x8xf32>
    "tpu.trace_start"() <{level = 10 : i32, message = "bqk,bkd->bqd"}> : () -> ()
    %cst_23 = arith.constant dense<0.000000e+00> : vector<4x8x8xf32>
    %69 = tpu.matmul %68, %54, %cst_23 {dimension_numbers = #tpu.dot_dimension_numbers<[2], [1], [1], [2], [0, 0, 0, 1, 1, 2], [0], [0]>} : vector<4x8x8xf32>, vector<4x8x8xf32>, vector<4x8x8xf32> -> vector<4x8x8xf32>
    "tpu.trace_stop"() : () -> ()
    %70 = vector.extract_strided_slice %8 {offsets = [0, 0, 24], sizes = [4, 8, 8], strides = [1, 1, 1]} : vector<4x8x32xf32> to vector<4x8x8xf32>
    %71 = vector.extract_strided_slice %9 {offsets = [0, 0, 24], sizes = [4, 8, 8], strides = [1, 1, 1]} : vector<4x8x64xf32> to vector<4x8x8xf32>
    %72 = vector.extract_strided_slice %9 {offsets = [0, 0, 56], sizes = [4, 8, 8], strides = [1, 1, 1]} : vector<4x8x64xf32> to vector<4x8x8xf32>
    "tpu.trace_start"() <{level = 10 : i32, message = "bqd,bkd->bqk"}> : () -> ()
    %cst_24 = arith.constant dense<0.000000e+00> : vector<4x8x8xf32>
    %73 = tpu.matmul %70, %71, %cst_24 {dimension_numbers = #tpu.dot_dimension_numbers<[2], [2], [1], [1], [0, 0, 0, 1, 1, 1], [0], [0]>} : vector<4x8x8xf32>, vector<4x8x8xf32>, vector<4x8x8xf32> -> vector<4x8x8xf32>
    "tpu.trace_stop"() : () -> ()
    %74 = vector.shape_cast %15 : vector<1x8xf32> to vector<1x1x8xf32>
    %75 = vector.broadcast %74 : vector<1x1x8xf32> to vector<4x8x8xf32>
    %76 = arith.addf %73, %75 : vector<4x8x8xf32>
    %cst_25 = arith.constant dense<0xFF800000> : vector<4x8xf32>
    %77 = vector.multi_reduction <maximumf>, %76, %cst_25 [2] : vector<4x8x8xf32> to vector<4x8xf32>
    %78 = vector.shape_cast %77 : vector<4x8xf32> to vector<4x8x1xf32>
    %79 = vector.broadcast %78 : vector<4x8x1xf32> to vector<4x8x8xf32>
    %80 = arith.subf %76, %79 : vector<4x8x8xf32>
    %81 = math.exp %80 : vector<4x8x8xf32>
    %cst_26 = arith.constant dense<0.000000e+00> : vector<4x8xf32>
    %82 = vector.multi_reduction <add>, %81, %cst_26 [2] : vector<4x8x8xf32> to vector<4x8xf32>
    %83 = vector.shape_cast %82 : vector<4x8xf32> to vector<4x8x1xf32>
    %84 = tpu.reciprocal %83 {approx = true} : vector<4x8x1xf32> -> vector<4x8x1xf32>
    %85 = vector.broadcast %84 : vector<4x8x1xf32> to vector<4x8x8xf32>
    %86 = arith.mulf %81, %85 : vector<4x8x8xf32>
    "tpu.trace_start"() <{level = 10 : i32, message = "bqk,bkd->bqd"}> : () -> ()
    %cst_27 = arith.constant dense<0.000000e+00> : vector<4x8x8xf32>
    %87 = tpu.matmul %86, %72, %cst_27 {dimension_numbers = #tpu.dot_dimension_numbers<[2], [1], [1], [2], [0, 0, 0, 1, 1, 2], [0], [0]>} : vector<4x8x8xf32>, vector<4x8x8xf32>, vector<4x8x8xf32> -> vector<4x8x8xf32>
    "tpu.trace_stop"() : () -> ()
    %88 = tpu.concatenate %33, %51, %69, %87 in 2 : vector<4x8x8xf32>, vector<4x8x8xf32>, vector<4x8x8xf32>, vector<4x8x8xf32> -> vector<4x8x32xf32>
    %c0_28 = arith.constant 0 : index
    %c0_29 = arith.constant 0 : index
    %c0_30 = arith.constant 0 : index
    %89 = vector.load %arg5[%c0_28, %c0_29, %c0_30] : memref<4x8x32xf32, #tpu.memory_space<vmem>>, vector<4x8x32xf32>
    tpu.vector_store %arg5[%c0_28, %c0_29, %c0_30], %88 {strides = array<i32>} : memref<4x8x32xf32, #tpu.memory_space<vmem>>, vector<4x8x32xf32>,
    return
  }
  func.func @transform_0(%arg0: i32) -> (i32, i32, i32) {
    %c0_i32 = arith.constant 0 : i32
    %c0_i32_0 = arith.constant 0 : i32
    %c0_i32_1 = arith.constant 0 : i32
    return %arg0, %c0_i32, %c0_i32_0 : i32, i32, i32
  }
  func.func @transform_1(%arg0: i32) -> (i32, i32, i32) {
    %c0_i32 = arith.constant 0 : i32
    %c0_i32_0 = arith.constant 0 : i32
    %c0_i32_1 = arith.constant 0 : i32
    return %arg0, %c0_i32, %c0_i32_0 : i32, i32, i32
  }
  func.func @transform_2(%arg0: i32) -> (i32, i32) {
    %c0_i32 = arith.constant 0 : i32
    %c0_i32_0 = arith.constant 0 : i32
    %c0_i32_1 = arith.constant 0 : i32
    return %c0_i32, %c0_i32_0 : i32, i32
  }
  func.func @transform_3(%arg0: i32) -> (i32, i32) {
    %c0_i32 = arith.constant 0 : i32
    %c0_i32_0 = arith.constant 0 : i32
    %c0_i32_1 = arith.constant 0 : i32
    return %c0_i32, %c0_i32_0 : i32, i32
  }
  func.func @transform_4(%arg0: i32) -> (i32, i32, i32) {
    %c0_i32 = arith.constant 0 : i32
    %c0_i32_0 = arith.constant 0 : i32
    %c0_i32_1 = arith.constant 0 : i32
    return %arg0, %c0_i32, %c0_i32_0 : i32, i32, i32
  }
}

</mosaic_0001>

<llo_original>
// kernel: tpu_custom_call.1
$region0: #{tpu_custom_call.1}
  #allocation0 [shape = 'u32[]', space=smem, size = 0x4, offset = 0x4, fixed_abs, tag = 'smem constant byte address 0x4 - core index']
  #allocation1 [shape = 'u32[72,128]{1,0:T(1,128)}', space=vmem, size = 0x9000, scoped, tag = 'internal scratch']
  %s0 = inlined_call_operand.hbm [shape: f32[4,8,16], index: 0, kind: input, shape index: {}]
  %s1 = inlined_call_operand.hbm [shape: f32[4,8,12], index: 1, kind: input, shape index: {}]
  %s2 = inlined_call_operand.hbm [shape: f32[16,32], index: 2, kind: input, shape index: {}]
  %s3 = inlined_call_operand.hbm [shape: f32[12,64], index: 3, kind: input, shape index: {}]
  %s4 = inlined_call_operand.hbm [shape: f32[4,8,32], index: 4, kind: output, shape index: {}]
  %s5 = sld [smem:[#allocation0]]
  $region42: #{tpu_custom_call.1} parent=0
    _
  %s7 = ssub.s32 1, %s5
  %s8 = scalar_select 0, %s7, %s5
  $region1: #{tpu_custom_call.1} parent=0
    #allocation2 [shape = 'u8[16384]{0}', space=vmem, size = 0x4000, scoped, tag = 'input window, operand 0, single buffered']
    #allocation3 [shape = 's32[1]{0}', space=sflag, size = 0x4, scoped, tag = 'scoped memory for tpu_custom_call.1']
    #allocation4 [shape = 's32[1]{0}', space=sflag, size = 0x4, scoped, tag = 'scoped memory for tpu_custom_call.1']
    #allocation5 [shape = 'u8[16384]{0}', space=vmem, size = 0x4000, scoped, tag = 'input window, operand 1, single buffered']
    #allocation6 [shape = 's32[1]{0}', space=sflag, size = 0x4, scoped, tag = 'scoped memory for tpu_custom_call.1']
    #allocation7 [shape = 'u8[8192]{0}', space=vmem, size = 0x2000, scoped, tag = 'input window, operand 2, single buffered']
    #allocation8 [shape = 'u8[8192]{0}', space=vmem, size = 0x2000, scoped, tag = 'input window, operand 3, single buffered']
    #allocation9 [shape = 's32[1]{0}', space=sflag, size = 0x4, scoped, tag = 'scoped memory for tpu_custom_call.1']
    #allocation10 [shape = 'u8[16384]{0}', space=vmem, size = 0x4000, scoped, tag = 'output window, operand 0, single buffered']
    %9 = vsyncpa [#allocation3], 0
    %10 = vsyncpa [#allocation6], 0
    %11 = vsyncpa [#allocation9], 0
    %12 = vsyncpa [#allocation4], 0
    // Predicated region
    $region2: #{tpu_custom_call.1} parent=1 // pred_check
      _
    $region3: #{tpu_custom_call.1} parent=1 // pred_check_branch
      %14 = sbr.rel (0) target = $region5
    $region4: #{tpu_custom_call.1} parent=1 // pred_region
      %16 = vsyncadd [#allocation3], 0
      %s17 = sshll.u32 %s0, 4
      %s18 = int_to_ptr.hbm [resolvable:$true] %s17
      %s19 = sshll.u32 [#allocation2], 4
      %s20 = int_to_ptr.vmem [resolvable:$true] %s19
      %25 = dma.hbm_to_vmem [thread:$0]  %s18, 512, %s20, [#allocation3], 128, 128, 8
    $region5: #{tpu_custom_call.1} parent=1 // pred_fallthru
      _
    // Predicated region
    $region6: #{tpu_custom_call.1} parent=1 // pred_check
      _
    $region7: #{tpu_custom_call.1} parent=1 // pred_check_branch
      %27 = sbr.rel (0) target = $region9
    $region8: #{tpu_custom_call.1} parent=1 // pred_region
      %29 = vsyncadd [#allocation6], 0
      %s30 = sshll.u32 %s1, 4
      %s31 = int_to_ptr.hbm [resolvable:$true] %s30
      %s32 = sshll.u32 [#allocation5], 4
      %s33 = int_to_ptr.vmem [resolvable:$true] %s32
      %38 = dma.hbm_to_vmem [thread:$0]  %s31, 512, %s33, [#allocation6], 128, 128, 8
    $region9: #{tpu_custom_call.1} parent=1 // pred_fallthru
      _
    // Predicated region
    $region10: #{tpu_custom_call.1} parent=1 // pred_check
      _
    $region11: #{tpu_custom_call.1} parent=1 // pred_check_branch
      %40 = sbr.rel (0) target = $region13
    $region12: #{tpu_custom_call.1} parent=1 // pred_region
      %42 = vsyncadd [#allocation6], 0
      %s43 = sshll.u32 %s2, 4
      %s44 = int_to_ptr.hbm [resolvable:$true] %s43
      %s45 = sshll.u32 [#allocation7], 4
      %s46 = int_to_ptr.vmem [resolvable:$true] %s45
      %51 = dma.hbm_to_vmem [thread:$0]  %s44, 256, %s46, [#allocation6], 128, 128, 8
    $region13: #{tpu_custom_call.1} parent=1 // pred_fallthru
      _
    // Predicated region
    $region14: #{tpu_custom_call.1} parent=1 // pred_check
      _
    $region15: #{tpu_custom_call.1} parent=1 // pred_check_branch
      %53 = sbr.rel (0) target = $region17
    $region16: #{tpu_custom_call.1} parent=1 // pred_region
      %55 = vsyncadd [#allocation9], 0
      %s56 = sshll.u32 %s3, 4
      %s57 = int_to_ptr.hbm [resolvable:$true] %s56
      %s58 = sshll.u32 [#allocation8], 4
      %s59 = int_to_ptr.vmem [resolvable:$true] %s58
      %64 = dma.hbm_to_vmem [thread:$0]  %s57, 256, %s59, [#allocation9], 128, 128, 8
    $region17: #{tpu_custom_call.1} parent=1 // pred_fallthru
      _
    // Predicated region
    $region18: #{tpu_custom_call.1} parent=1 // pred_check
      _
    $region19: #{tpu_custom_call.1} parent=1 // pred_check_branch
      %66 = sbr.rel (0) target = $region21
    $region20: #{tpu_custom_call.1} parent=1 // pred_region
      %68 = dma.done [#allocation3], 512
    $region21: #{tpu_custom_call.1} parent=1 // pred_fallthru
      _
    // Predicated region
    $region22: #{tpu_custom_call.1} parent=1 // pred_check
      _
    $region23: #{tpu_custom_call.1} parent=1 // pred_check_branch
      %70 = sbr.rel (0) target = $region25
    $region24: #{tpu_custom_call.1} parent=1 // pred_region
      %72 = dma.done [#allocation6], 512
    $region25: #{tpu_custom_call.1} parent=1 // pred_fallthru
      _
    // Predicated region
    $region26: #{tpu_custom_call.1} parent=1 // pred_check
      _
    $region27: #{tpu_custom_call.1} parent=1 // pred_check_branch
      %74 = sbr.rel (0) target = $region29
    $region28: #{tpu_custom_call.1} parent=1 // pred_region
      %76 = dma.done [#allocation6], 256
    $region29: #{tpu_custom_call.1} parent=1 // pred_fallthru
      _
    // Predicated region
    $region30: #{tpu_custom_call.1} parent=1 // pred_check
      _
    $region31: #{tpu_custom_call.1} parent=1 // pred_check_branch
      %78 = sbr.rel (0) target = $region33
    $region32: #{tpu_custom_call.1} parent=1 // pred_region
      %80 = dma.done [#allocation9], 256
    $region33: #{tpu_custom_call.1} parent=1 // pred_fallthru
      _
    %v81 = vld [vmem:[#allocation2] sm:$0xff]
    %v82 = vld [vmem:[#allocation2 + $0x8] sm:$0xff]
    %v83 = vld [vmem:[#allocation2 + $0x10] sm:$0xff]
    %v84 = vld [vmem:[#allocation2 + $0x18] sm:$0xff]
    %v85 = vld [vmem:[#allocation5] sm:$0xff]
    %v86 = vld [vmem:[#allocation5 + $0x8] sm:$0xff]
    %v87 = vld [vmem:[#allocation5 + $0x10] sm:$0xff]
    %v88 = vld [vmem:[#allocation5 + $0x18] sm:$0xff]
    %v89 = vld [vmem:[#allocation7] sm:$0xff]
    %v90 = vld [vmem:[#allocation7 + $0x8] sm:$0xff]
    %vm91 = vcmask 130048
    %v93 = vsel %vm91, %v81, 0
    %v96 = vsel %vm91, %v82, 0
    %v99 = vsel %vm91, %v83, 0
    %v102 = vsel %vm91, %v84, 0
    %104 = vmatpush.msra.mxu0 0.0
    %105 = vmatpush.msra.mxu0 0.0
    %106 = vmatpush.msra.mxu0 0.0
    %107 = vmatpush.msra.mxu0 0.0
    %108 = vmatpush.msra.mxu0 0.0
    %109 = vmatpush.msra.mxu0 0.0
    %110 = vmatpush.msra.mxu0 0.0
    %111 = vmatpush.msra.mxu0 0.0
    %112 = vmatpush.msra.mxu0 0.0
    %113 = vmatpush.msra.mxu0 0.0
    %114 = vmatpush.msra.mxu0 0.0
    %115 = vmatpush.msra.mxu0 0.0
    %116 = vmatpush.msra.mxu0 0.0
    %117 = vmatpush.msra.mxu0 0.0
    %118 = vmatpush.msra.mxu0 %v90
    %119 = vmatpush.msra.mxu0 %v89
    %120 = vmatmul.f32.gmra.mxu0 %v93
    %v121 = vpop.f32.mrf.mxu0
    %v122 = vadd.f32 0.0, %v121
    %123 = vmatmul.f32.gmra.mxu0 %v96
    %v124 = vpop.f32.mrf.mxu0
    %v125 = vadd.f32 0.0, %v124
    %126 = vmatmul.f32.gmra.mxu0 %v99
    %v127 = vpop.f32.mrf.mxu0
    %v128 = vadd.f32 0.0, %v127
    %129 = vmatmul.f32.gmra.mxu0 %v102
    %v130 = vpop.f32.mrf.mxu0
    %v131 = vadd.f32 0.0, %v130
    %132 = vdwg.mxu0
    %v133 = vld [vmem:[#allocation8] sm:$0xff]
    %v134 = vld [vmem:[#allocation8 + $0x8] sm:$0xf]
    %vm135 = vcmask 97280
    %v137 = vsel %vm135, %v85, 0
    %v140 = vsel %vm135, %v86, 0
    %v143 = vsel %vm135, %v87, 0
    %v146 = vsel %vm135, %v88, 0
    %vm148 = vcmask 1043456
    %v150 = vsel %vm148, %v134, 0
    %152 = vmatpush.msra.mxu0 0.0
    %153 = vmatpush.msra.mxu0 0.0
    %154 = vmatpush.msra.mxu0 0.0
    %155 = vmatpush.msra.mxu0 0.0
    %156 = vmatpush.msra.mxu0 0.0
    %157 = vmatpush.msra.mxu0 0.0
    %158 = vmatpush.msra.mxu0 0.0
    %159 = vmatpush.msra.mxu0 0.0
    %160 = vmatpush.msra.mxu0 0.0
    %161 = vmatpush.msra.mxu0 0.0
    %162 = vmatpush.msra.mxu0 0.0
    %163 = vmatpush.msra.mxu0 0.0
    %164 = vmatpush.msra.mxu0 0.0
    %165 = vmatpush.msra.mxu0 0.0
    %166 = vmatpush.msra.mxu0 %v150
    %167 = vmatpush.msra.mxu0 %v133
    %168 = vmatmul.f32.gmra.mxu0 %v137
    %v169 = vpop.f32.mrf.mxu0
    %v170 = vadd.f32 0.0, %v169
    %171 = vmatmul.f32.gmra.mxu0 %v140
    %v172 = vpop.f32.mrf.mxu0
    %v173 = vadd.f32 0.0, %v172
    %174 = vmatmul.f32.gmra.mxu0 %v143
    %v175 = vpop.f32.mrf.mxu0
    %v176 = vadd.f32 0.0, %v175
    %177 = vmatmul.f32.gmra.mxu0 %v146
    %v178 = vpop.f32.mrf.mxu0
    %v179 = vadd.f32 0.0, %v178
    %180 = vdwg.mxu0
    %v181 = vlaneseq
    %v182 = vand.u32 %v181, 127
    %vm183 = vcmp.lt.s32.totalorder %v182, 6
    %v184 = vsel %vm183, 0.0, -1e+30
    %vm185 = vcmask 64512
    %v187 = vsel %vm185, %v122, 0
    %v190 = vsel %vm185, %v170, 0
    %192 = vmatpush.xpose.msra.mxu0 0.0
    %193 = vmatpush.xpose.msra.mxu0 0.0
    %194 = vmatpush.xpose.msra.mxu0 0.0
    %195 = vmatpush.xpose.msra.mxu0 0.0
    %196 = vmatpush.xpose.msra.mxu0 0.0
    %197 = vmatpush.xpose.msra.mxu0 0.0
    %198 = vmatpush.xpose.msra.mxu0 0.0
    %199 = vmatpush.xpose.msra.mxu0 0.0
    %200 = vmatpush.xpose.msra.mxu0 0.0
    %201 = vmatpush.xpose.msra.mxu0 0.0
    %202 = vmatpush.xpose.msra.mxu0 0.0
    %203 = vmatpush.xpose.msra.mxu0 0.0
    %204 = vmatpush.xpose.msra.mxu0 0.0
    %205 = vmatpush.xpose.msra.mxu0 0.0
    %206 = vmatpush.xpose.msra.mxu0 0.0
    %207 = vmatpush.xpose.msra.mxu0 %v190
    %208 = vmatmul.f32.gmra.mxu0 %v187
    %v209 = vpop.f32.mrf.mxu0
    %v210 = vadd.f32 %v184, %v209
    %211 = vdwg.mxu0
    %v213 = vsel %vm185, %v125, 0
    %v216 = vsel %vm185, %v173, 0
    %218 = vmatpush.xpose.msra.mxu0 0.0
    %219 = vmatpush.xpose.msra.mxu0 0.0
    %220 = vmatpush.xpose.msra.mxu0 0.0
    %221 = vmatpush.xpose.msra.mxu0 0.0
    %222 = vmatpush.xpose.msra.mxu0 0.0
    %223 = vmatpush.xpose.msra.mxu0 0.0
    %224 = vmatpush.xpose.msra.mxu0 0.0
    %225 = vmatpush.xpose.msra.mxu0 0.0
    %226 = vmatpush.xpose.msra.mxu0 0.0
    %227 = vmatpush.xpose.msra.mxu0 0.0
    %228 = vmatpush.xpose.msra.mxu0 0.0
    %229 = vmatpush.xpose.msra.mxu0 0.0
    %230 = vmatpush.xpose.msra.mxu0 0.0
    %231 = vmatpush.xpose.msra.mxu0 0.0
    %232 = vmatpush.xpose.msra.mxu0 0.0
    %233 = vmatpush.xpose.msra.mxu0 %v216
    %234 = vmatmul.f32.gmra.mxu0 %v213
    %v235 = vpop.f32.mrf.mxu0
    %v236 = vadd.f32 %v184, %v235
    %237 = vdwg.mxu0
    %v239 = vsel %vm185, %v128, 0
    %v242 = vsel %vm185, %v176, 0
    %244 = vmatpush.xpose.msra.mxu0 0.0
    %245 = vmatpush.xpose.msra.mxu0 0.0
    %246 = vmatpush.xpose.msra.mxu0 0.0
    %247 = vmatpush.xpose.msra.mxu0 0.0
    %248 = vmatpush.xpose.msra.mxu0 0.0
    %249 = vmatpush.xpose.msra.mxu0 0.0
    %250 = vmatpush.xpose.msra.mxu0 0.0
    %251 = vmatpush.xpose.msra.mxu0 0.0
    %252 = vmatpush.xpose.msra.mxu0 0.0
    %253 = vmatpush.xpose.msra.mxu0 0.0
    %254 = vmatpush.xpose.msra.mxu0 0.0
    %255 = vmatpush.xpose.msra.mxu0 0.0
    %256 = vmatpush.xpose.msra.mxu0 0.0
    %257 = vmatpush.xpose.msra.mxu0 0.0
    %258 = vmatpush.xpose.msra.mxu0 0.0
    %259 = vmatpush.xpose.msra.mxu0 %v242
    %260 = vmatmul.f32.gmra.mxu0 %v239
    %v261 = vpop.f32.mrf.mxu0
    %v262 = vadd.f32 %v184, %v261
    %263 = vdwg.mxu0
    %v265 = vsel %vm185, %v131, 0
    %v268 = vsel %vm185, %v179, 0
    %270 = vmatpush.xpose.msra.mxu0 0.0
    %271 = vmatpush.xpose.msra.mxu0 0.0
    %272 = vmatpush.xpose.msra.mxu0 0.0
    %273 = vmatpush.xpose.msra.mxu0 0.0
    %274 = vmatpush.xpose.msra.mxu0 0.0
    %275 = vmatpush.xpose.msra.mxu0 0.0
    %276 = vmatpush.xpose.msra.mxu0 0.0
    %277 = vmatpush.xpose.msra.mxu0 0.0
    %278 = vmatpush.xpose.msra.mxu0 0.0
    %279 = vmatpush.xpose.msra.mxu0 0.0
    %280 = vmatpush.xpose.msra.mxu0 0.0
    %281 = vmatpush.xpose.msra.mxu0 0.0
    %282 = vmatpush.xpose.msra.mxu0 0.0
    %283 = vmatpush.xpose.msra.mxu0 0.0
    %284 = vmatpush.xpose.msra.mxu0 0.0
    %285 = vmatpush.xpose.msra.mxu0 %v268
    %286 = vmatmul.f32.gmra.mxu0 %v265
    %v287 = vpop.f32.mrf.mxu0
    %v288 = vadd.f32 %v184, %v287
    %289 = vdwg.mxu0
    %v290 = vsel %vm185, %v210, -inf
    %291 = vmax.xlane.f32.xlu0 %v290
    %v292 = vpop.xlane.xlu0 %291
    %v293 = vsel %vm185, %v236, -inf
    %294 = vmax.xlane.f32.xlu0 %v293
    %v295 = vpop.xlane.xlu0 %294
    %v296 = vsel %vm185, %v262, -inf
    %297 = vmax.xlane.f32.xlu0 %v296
    %v298 = vpop.xlane.xlu0 %297
    %v299 = vsel %vm185, %v288, -inf
    %300 = vmax.xlane.f32.xlu0 %v299
    %v301 = vpop.xlane.xlu0 %300
    %v302 = vsub.f32 %v210, %v292
    %v303 = vsub.f32 %v236, %v295
    %v304 = vsub.f32 %v262, %v298
    %v305 = vsub.f32 %v288, %v301
    %v306 = vmul.f32 %v302, 1.442695
    %v307 = vpow.pop %v306
    %v308 = vmul.f32 %v303, 1.442695
    %v309 = vpow.pop %v308
    %v310 = vmul.f32 %v304, 1.442695
    %v311 = vpow.pop %v310
    %v312 = vmul.f32 %v305, 1.442695
    %v313 = vpow.pop %v312
    %v314 = vsel %vm185, %v307, 0.0
    %315 = vadd.xlane.f32.xlu0 %v314
    %v316 = vpop.xlane.xlu0 %315
    %v317 = vsel %vm185, %v309, 0.0
    %318 = vadd.xlane.f32.xlu0 %v317
    %v319 = vpop.xlane.xlu0 %318
    %v320 = vsel %vm185, %v311, 0.0
    %321 = vadd.xlane.f32.xlu0 %v320
    %v322 = vpop.xlane.xlu0 %321
    %v323 = vsel %vm185, %v313, 0.0
    %324 = vadd.xlane.f32.xlu0 %v323
    %v325 = vpop.xlane.xlu0 %324
    %v326 = vrcp.pop %v316
    %v327 = vrcp.pop %v319
    %v328 = vrcp.pop %v322
    %v329 = vrcp.pop %v325
    %v330 = vmul.f32 %v307, %v326
    %v331 = vmul.f32 %v309, %v327
    %v332 = vmul.f32 %v311, %v328
    %v333 = vmul.f32 %v313, %v329
    %334 = vrot.lane.b32.xlu0 %v170, 96
    %v335 = vpop.permute.xlu0 %334
    %v338 = vsel %vm185, %v330, 0
    %340 = vmatpush.msra.mxu0 0.0
    %341 = vmatpush.msra.mxu0 0.0
    %342 = vmatpush.msra.mxu0 0.0
    %343 = vmatpush.msra.mxu0 0.0
    %344 = vmatpush.msra.mxu0 0.0
    %345 = vmatpush.msra.mxu0 0.0
    %346 = vmatpush.msra.mxu0 0.0
    %347 = vmatpush.msra.mxu0 0.0
    %348 = vmatpush.msra.mxu0 0.0
    %349 = vmatpush.msra.mxu0 0.0
    %350 = vmatpush.msra.mxu0 0.0
    %351 = vmatpush.msra.mxu0 0.0
    %352 = vmatpush.msra.mxu0 0.0
    %353 = vmatpush.msra.mxu0 0.0
    %354 = vmatpush.msra.mxu0 0.0
    %355 = vmatpush.msra.mxu0 %v335
    %356 = vmatmul.f32.gmra.mxu0 %v338
    %v357 = vpop.f32.mrf.mxu0
    %v358 = vadd.f32 0.0, %v357
    %359 = vdwg.mxu0
    %360 = vrot.lane.b32.xlu0 %v173, 96
    %v361 = vpop.permute.xlu0 %360
    %v364 = vsel %vm185, %v331, 0
    %366 = vmatpush.msra.mxu0 0.0
    %367 = vmatpush.msra.mxu0 0.0
    %368 = vmatpush.msra.mxu0 0.0
    %369 = vmatpush.msra.mxu0 0.0
    %370 = vmatpush.msra.mxu0 0.0
    %371 = vmatpush.msra.mxu0 0.0
    %372 = vmatpush.msra.mxu0 0.0
    %373 = vmatpush.msra.mxu0 0.0
    %374 = vmatpush.msra.mxu0 0.0
    %375 = vmatpush.msra.mxu0 0.0
    %376 = vmatpush.msra.mxu0 0.0
    %377 = vmatpush.msra.mxu0 0.0
    %378 = vmatpush.msra.mxu0 0.0
    %379 = vmatpush.msra.mxu0 0.0
    %380 = vmatpush.msra.mxu0 0.0
    %381 = vmatpush.msra.mxu0 %v361
    %382 = vmatmul.f32.gmra.mxu0 %v364
    %v383 = vpop.f32.mrf.mxu0
    %v384 = vadd.f32 0.0, %v383
    %385 = vdwg.mxu0
    %386 = vrot.lane.b32.xlu0 %v176, 96
    %v387 = vpop.permute.xlu0 %386
    %v390 = vsel %vm185, %v332, 0
    %392 = vmatpush.msra.mxu0 0.0
    %393 = vmatpush.msra.mxu0 0.0
    %394 = vmatpush.msra.mxu0 0.0
    %395 = vmatpush.msra.mxu0 0.0
    %396 = vmatpush.msra.mxu0 0.0
    %397 = vmatpush.msra.mxu0 0.0
    %398 = vmatpush.msra.mxu0 0.0
    %399 = vmatpush.msra.mxu0 0.0
    %400 = vmatpush.msra.mxu0 0.0
    %401 = vmatpush.msra.mxu0 0.0
    %402 = vmatpush.msra.mxu0 0.0
    %403 = vmatpush.msra.mxu0 0.0
    %404 = vmatpush.msra.mxu0 0.0
    %405 = vmatpush.msra.mxu0 0.0
    %406 = vmatpush.msra.mxu0 0.0
    %407 = vmatpush.msra.mxu0 %v387
    %408 = vmatmul.f32.gmra.mxu0 %v390
    %v409 = vpop.f32.mrf.mxu0
    %v410 = vadd.f32 0.0, %v409
    %411 = vdwg.mxu0
    %412 = vrot.lane.b32.xlu0 %v179, 96
    %v413 = vpop.permute.xlu0 %412
    %v416 = vsel %vm185, %v333, 0
    %418 = vmatpush.msra.mxu0 0.0
    %419 = vmatpush.msra.mxu0 0.0
    %420 = vmatpush.msra.mxu0 0.0
    %421 = vmatpush.msra.mxu0 0.0
    %422 = vmatpush.msra.mxu0 0.0
    %423 = vmatpush.msra.mxu0 0.0
    %424 = vmatpush.msra.mxu0 0.0
    %425 = vmatpush.msra.mxu0 0.0
    %426 = vmatpush.msra.mxu0 0.0
    %427 = vmatpush.msra.mxu0 0.0
    %428 = vmatpush.msra.mxu0 0.0
    %429 = vmatpush.msra.mxu0 0.0
    %430 = vmatpush.msra.mxu0 0.0
    %431 = vmatpush.msra.mxu0 0.0
    %432 = vmatpush.msra.mxu0 0.0
    %433 = vmatpush.msra.mxu0 %v413
    %434 = vmatmul.f32.gmra.mxu0 %v416
    %v435 = vpop.f32.mrf.mxu0
    %v436 = vadd.f32 0.0, %v435
    %437 = vdwg.mxu0
    %438 = vrot.lane.b32.xlu0 %v122, 120
    %v439 = vpop.permute.xlu0 %438
    %440 = vrot.lane.b32.xlu0 %v170, 120
    %v441 = vpop.permute.xlu0 %440
    %v442 = vsel %vm185, %v439, 0
    %v444 = vsel %vm185, %v441, 0
    %446 = vmatpush.xpose.msra.mxu0 0.0
    %447 = vmatpush.xpose.msra.mxu0 0.0
    %448 = vmatpush.xpose.msra.mxu0 0.0
    %449 = vmatpush.xpose.msra.mxu0 0.0
    %450 = vmatpush.xpose.msra.mxu0 0.0
    %451 = vmatpush.xpose.msra.mxu0 0.0
    %452 = vmatpush.xpose.msra.mxu0 0.0
    %453 = vmatpush.xpose.msra.mxu0 0.0
    %454 = vmatpush.xpose.msra.mxu0 0.0
    %455 = vmatpush.xpose.msra.mxu0 0.0
    %456 = vmatpush.xpose.msra.mxu0 0.0
    %457 = vmatpush.xpose.msra.mxu0 0.0
    %458 = vmatpush.xpose.msra.mxu0 0.0
    %459 = vmatpush.xpose.msra.mxu0 0.0
    %460 = vmatpush.xpose.msra.mxu0 0.0
    %461 = vmatpush.xpose.msra.mxu0 %v444
    %462 = vmatmul.f32.gmra.mxu0 %v442
    %v463 = vpop.f32.mrf.mxu0
    %v464 = vadd.f32 %v184, %v463
    %465 = vdwg.mxu0
    %466 = vrot.lane.b32.xlu0 %v125, 120
    %v467 = vpop.permute.xlu0 %466
    %468 = vrot.lane.b32.xlu0 %v173, 120
    %v469 = vpop.permute.xlu0 %468
    %v470 = vsel %vm185, %v467, 0
    %v472 = vsel %vm185, %v469, 0
    %474 = vmatpush.xpose.msra.mxu0 0.0
    %475 = vmatpush.xpose.msra.mxu0 0.0
    %476 = vmatpush.xpose.msra.mxu0 0.0
    %477 = vmatpush.xpose.msra.mxu0 0.0
    %478 = vmatpush.xpose.msra.mxu0 0.0
    %479 = vmatpush.xpose.msra.mxu0 0.0
    %480 = vmatpush.xpose.msra.mxu0 0.0
    %481 = vmatpush.xpose.msra.mxu0 0.0
    %482 = vmatpush.xpose.msra.mxu0 0.0
    %483 = vmatpush.xpose.msra.mxu0 0.0
    %484 = vmatpush.xpose.msra.mxu0 0.0
    %485 = vmatpush.xpose.msra.mxu0 0.0
    %486 = vmatpush.xpose.msra.mxu0 0.0
    %487 = vmatpush.xpose.msra.mxu0 0.0
    %488 = vmatpush.xpose.msra.mxu0 0.0
    %489 = vmatpush.xpose.msra.mxu0 %v472
    %490 = vmatmul.f32.gmra.mxu0 %v470
    %v491 = vpop.f32.mrf.mxu0
    %v492 = vadd.f32 %v184, %v491
    %493 = vdwg.mxu0
    %494 = vrot.lane.b32.xlu0 %v128, 120
    %v495 = vpop.permute.xlu0 %494
    %496 = vrot.lane.b32.xlu0 %v176, 120
    %v497 = vpop.permute.xlu0 %496
    %v498 = vsel %vm185, %v495, 0
    %v500 = vsel %vm185, %v497, 0
    %502 = vmatpush.xpose.msra.mxu0 0.0
    %503 = vmatpush.xpose.msra.mxu0 0.0
    %504 = vmatpush.xpose.msra.mxu0 0.0
    %505 = vmatpush.xpose.msra.mxu0 0.0
    %506 = vmatpush.xpose.msra.mxu0 0.0
    %507 = vmatpush.xpose.msra.mxu0 0.0
    %508 = vmatpush.xpose.msra.mxu0 0.0
    %509 = vmatpush.xpose.msra.mxu0 0.0
    %510 = vmatpush.xpose.msra.mxu0 0.0
    %511 = vmatpush.xpose.msra.mxu0 0.0
    %512 = vmatpush.xpose.msra.mxu0 0.0
    %513 = vmatpush.xpose.msra.mxu0 0.0
    %514 = vmatpush.xpose.msra.mxu0 0.0
    %515 = vmatpush.xpose.msra.mxu0 0.0
    %516 = vmatpush.xpose.msra.mxu0 0.0
    %517 = vmatpush.xpose.msra.mxu0 %v500
    %518 = vmatmul.f32.gmra.mxu0 %v498
    %v519 = vpop.f32.mrf.mxu0
    %v520 = vadd.f32 %v184, %v519
    %521 = vdwg.mxu0
    %522 = vrot.lane.b32.xlu0 %v131, 120
    %v523 = vpop.permute.xlu0 %522
    %524 = vrot.lane.b32.xlu0 %v179, 120
    %v525 = vpop.permute.xlu0 %524
    %v526 = vsel %vm185, %v523, 0
    %v528 = vsel %vm185, %v525, 0
    %530 = vmatpush.xpose.msra.mxu0 0.0
    %531 = vmatpush.xpose.msra.mxu0 0.0
    %532 = vmatpush.xpose.msra.mxu0 0.0
    %533 = vmatpush.xpose.msra.mxu0 0.0
    %534 = vmatpush.xpose.msra.mxu0 0.0
    %535 = vmatpush.xpose.msra.mxu0 0.0
    %536 = vmatpush.xpose.msra.mxu0 0.0
    %537 = vmatpush.xpose.msra.mxu0 0.0
    %538 = vmatpush.xpose.msra.mxu0 0.0
    %539 = vmatpush.xpose.msra.mxu0 0.0
    %540 = vmatpush.xpose.msra.mxu0 0.0
    %541 = vmatpush.xpose.msra.mxu0 0.0
    %542 = vmatpush.xpose.msra.mxu0 0.0
    %543 = vmatpush.xpose.msra.mxu0 0.0
    %544 = vmatpush.xpose.msra.mxu0 0.0
    %545 = vmatpush.xpose.msra.mxu0 %v528
    %546 = vmatmul.f32.gmra.mxu0 %v526
    %v547 = vpop.f32.mrf.mxu0
    %v548 = vadd.f32 %v184, %v547
    %549 = vdwg.mxu0
    %v550 = vsel %vm185, %v464, -inf
    %551 = vmax.xlane.f32.xlu0 %v550
    %v552 = vpop.xlane.xlu0 %551
    %v553 = vsel %vm185, %v492, -inf
    %554 = vmax.xlane.f32.xlu0 %v553
    %v555 = vpop.xlane.xlu0 %554
    %v556 = vsel %vm185, %v520, -inf
    %557 = vmax.xlane.f32.xlu0 %v556
    %v558 = vpop.xlane.xlu0 %557
    %v559 = vsel %vm185, %v548, -inf
    %560 = vmax.xlane.f32.xlu0 %v559
    %v561 = vpop.xlane.xlu0 %560
    %v562 = vsub.f32 %v464, %v552
    %v563 = vsub.f32 %v492, %v555
    %v564 = vsub.f32 %v520, %v558
    %v565 = vsub.f32 %v548, %v561
    %v566 = vmul.f32 %v562, 1.442695
    %v567 = vpow.pop %v566
    %v568 = vmul.f32 %v563, 1.442695
    %v569 = vpow.pop %v568
    %v570 = vmul.f32 %v564, 1.442695
    %v571 = vpow.pop %v570
    %v572 = vmul.f32 %v565, 1.442695
    %v573 = vpow.pop %v572
    %v574 = vsel %vm185, %v567, 0.0
    %575 = vadd.xlane.f32.xlu0 %v574
    %v576 = vpop.xlane.xlu0 %575
    %v577 = vsel %vm185, %v569, 0.0
    %578 = vadd.xlane.f32.xlu0 %v577
    %v579 = vpop.xlane.xlu0 %578
    %v580 = vsel %vm185, %v571, 0.0
    %581 = vadd.xlane.f32.xlu0 %v580
    %v582 = vpop.xlane.xlu0 %581
    %v583 = vsel %vm185, %v573, 0.0
    %584 = vadd.xlane.f32.xlu0 %v583
    %v585 = vpop.xlane.xlu0 %584
    %v586 = vrcp.pop %v576
    %v587 = vrcp.pop %v579
    %v588 = vrcp.pop %v582
    %v589 = vrcp.pop %v585
    %v590 = vmul.f32 %v567, %v586
    %v591 = vmul.f32 %v569, %v587
    %v592 = vmul.f32 %v571, %v588
    %v593 = vmul.f32 %v573, %v589
    %594 = vrot.lane.b32.xlu0 %v170, 88
    %v595 = vpop.permute.xlu0 %594
    %v598 = vsel %vm185, %v590, 0
    %600 = vmatpush.msra.mxu0 0.0
    %601 = vmatpush.msra.mxu0 0.0
    %602 = vmatpush.msra.mxu0 0.0
    %603 = vmatpush.msra.mxu0 0.0
    %604 = vmatpush.msra.mxu0 0.0
    %605 = vmatpush.msra.mxu0 0.0
    %606 = vmatpush.msra.mxu0 0.0
    %607 = vmatpush.msra.mxu0 0.0
    %608 = vmatpush.msra.mxu0 0.0
    %609 = vmatpush.msra.mxu0 0.0
    %610 = vmatpush.msra.mxu0 0.0
    %611 = vmatpush.msra.mxu0 0.0
    %612 = vmatpush.msra.mxu0 0.0
    %613 = vmatpush.msra.mxu0 0.0
    %614 = vmatpush.msra.mxu0 0.0
    %615 = vmatpush.msra.mxu0 %v595
    %616 = vmatmul.f32.gmra.mxu0 %v598
    %v617 = vpop.f32.mrf.mxu0
    %v618 = vadd.f32 0.0, %v617
    %619 = vdwg.mxu0
    %620 = vrot.lane.b32.xlu0 %v173, 88
    %v621 = vpop.permute.xlu0 %620
    %v624 = vsel %vm185, %v591, 0
    %626 = vmatpush.msra.mxu0 0.0
    %627 = vmatpush.msra.mxu0 0.0
    %628 = vmatpush.msra.mxu0 0.0
    %629 = vmatpush.msra.mxu0 0.0
    %630 = vmatpush.msra.mxu0 0.0
    %631 = vmatpush.msra.mxu0 0.0
    %632 = vmatpush.msra.mxu0 0.0
    %633 = vmatpush.msra.mxu0 0.0
    %634 = vmatpush.msra.mxu0 0.0
    %635 = vmatpush.msra.mxu0 0.0
    %636 = vmatpush.msra.mxu0 0.0
    %637 = vmatpush.msra.mxu0 0.0
    %638 = vmatpush.msra.mxu0 0.0
    %639 = vmatpush.msra.mxu0 0.0
    %640 = vmatpush.msra.mxu0 0.0
    %641 = vmatpush.msra.mxu0 %v621
    %642 = vmatmul.f32.gmra.mxu0 %v624
    %v643 = vpop.f32.mrf.mxu0
    %v644 = vadd.f32 0.0, %v643
    %645 = vdwg.mxu0
    %646 = vrot.lane.b32.xlu0 %v176, 88
    %v647 = vpop.permute.xlu0 %646
    %v650 = vsel %vm185, %v592, 0
    %652 = vmatpush.msra.mxu0 0.0
    %653 = vmatpush.msra.mxu0 0.0
    %654 = vmatpush.msra.mxu0 0.0
    %655 = vmatpush.msra.mxu0 0.0
    %656 = vmatpush.msra.mxu0 0.0
    %657 = vmatpush.msra.mxu0 0.0
    %658 = vmatpush.msra.mxu0 0.0
    %659 = vmatpush.msra.mxu0 0.0
    %660 = vmatpush.msra.mxu0 0.0
    %661 = vmatpush.msra.mxu0 0.0
    %662 = vmatpush.msra.mxu0 0.0
    %663 = vmatpush.msra.mxu0 0.0
    %664 = vmatpush.msra.mxu0 0.0
    %665 = vmatpush.msra.mxu0 0.0
    %666 = vmatpush.msra.mxu0 0.0
    %667 = vmatpush.msra.mxu0 %v647
    %668 = vmatmul.f32.gmra.mxu0 %v650
    %v669 = vpop.f32.mrf.mxu0
    %v670 = vadd.f32 0.0, %v669
    %671 = vdwg.mxu0
    %672 = vrot.lane.b32.xlu0 %v179, 88
    %v673 = vpop.permute.xlu0 %672
    %v676 = vsel %vm185, %v593, 0
    %678 = vmatpush.msra.mxu0 0.0
    %679 = vmatpush.msra.mxu0 0.0
    %680 = vmatpush.msra.mxu0 0.0
    %681 = vmatpush.msra.mxu0 0.0
    %682 = vmatpush.msra.mxu0 0.0
    %683 = vmatpush.msra.mxu0 0.0
    %684 = vmatpush.msra.mxu0 0.0
    %685 = vmatpush.msra.mxu0 0.0
    %686 = vmatpush.msra.mxu0 0.0
    %687 = vmatpush.msra.mxu0 0.0
    %688 = vmatpush.msra.mxu0 0.0
    %689 = vmatpush.msra.mxu0 0.0
    %690 = vmatpush.msra.mxu0 0.0
    %691 = vmatpush.msra.mxu0 0.0
    %692 = vmatpush.msra.mxu0 0.0
    %693 = vmatpush.msra.mxu0 %v673
    %694 = vmatmul.f32.gmra.mxu0 %v676
    %v695 = vpop.f32.mrf.mxu0
    %v696 = vadd.f32 0.0, %v695
    %697 = vdwg.mxu0
    %698 = vrot.lane.b32.xlu0 %v122, 112
    %v699 = vpop.permute.xlu0 %698
    %700 = vrot.lane.b32.xlu0 %v170, 112
    %v701 = vpop.permute.xlu0 %700
    %v702 = vsel %vm185, %v699, 0
    %v704 = vsel %vm185, %v701, 0
    %706 = vmatpush.xpose.msra.mxu0 0.0
    %707 = vmatpush.xpose.msra.mxu0 0.0
    %708 = vmatpush.xpose.msra.mxu0 0.0
    %709 = vmatpush.xpose.msra.mxu0 0.0
    %710 = vmatpush.xpose.msra.mxu0 0.0
    %711 = vmatpush.xpose.msra.mxu0 0.0
    %712 = vmatpush.xpose.msra.mxu0 0.0
    %713 = vmatpush.xpose.msra.mxu0 0.0
    %714 = vmatpush.xpose.msra.mxu0 0.0
    %715 = vmatpush.xpose.msra.mxu0 0.0
    %716 = vmatpush.xpose.msra.mxu0 0.0
    %717 = vmatpush.xpose.msra.mxu0 0.0
    %718 = vmatpush.xpose.msra.mxu0 0.0
    %719 = vmatpush.xpose.msra.mxu0 0.0
    %720 = vmatpush.xpose.msra.mxu0 0.0
    %721 = vmatpush.xpose.msra.mxu0 %v704
    %722 = vmatmul.f32.gmra.mxu0 %v702
    %v723 = vpop.f32.mrf.mxu0
    %v724 = vadd.f32 %v184, %v723
    %725 = vdwg.mxu0
    %726 = vrot.lane.b32.xlu0 %v125, 112
    %v727 = vpop.permute.xlu0 %726
    %728 = vrot.lane.b32.xlu0 %v173, 112
    %v729 = vpop.permute.xlu0 %728
    %v730 = vsel %vm185, %v727, 0
    %v732 = vsel %vm185, %v729, 0
    %734 = vmatpush.xpose.msra.mxu0 0.0
    %735 = vmatpush.xpose.msra.mxu0 0.0
    %736 = vmatpush.xpose.msra.mxu0 0.0
    %737 = vmatpush.xpose.msra.mxu0 0.0
    %738 = vmatpush.xpose.msra.mxu0 0.0
    %739 = vmatpush.xpose.msra.mxu0 0.0
    %740 = vmatpush.xpose.msra.mxu0 0.0
    %741 = vmatpush.xpose.msra.mxu0 0.0
    %742 = vmatpush.xpose.msra.mxu0 0.0
    %743 = vmatpush.xpose.msra.mxu0 0.0
    %744 = vmatpush.xpose.msra.mxu0 0.0
    %745 = vmatpush.xpose.msra.mxu0 0.0
    %746 = vmatpush.xpose.msra.mxu0 0.0
    %747 = vmatpush.xpose.msra.mxu0 0.0
    %748 = vmatpush.xpose.msra.mxu0 0.0
    %749 = vmatpush.xpose.msra.mxu0 %v732
    %750 = vmatmul.f32.gmra.mxu0 %v730
    %v751 = vpop.f32.mrf.mxu0
    %v752 = vadd.f32 %v184, %v751
    %753 = vdwg.mxu0
    %754 = vrot.lane.b32.xlu0 %v128, 112
    %v755 = vpop.permute.xlu0 %754
    %756 = vrot.lane.b32.xlu0 %v176, 112
    %v757 = vpop.permute.xlu0 %756
    %v758 = vsel %vm185, %v755, 0
    %v760 = vsel %vm185, %v757, 0
    %762 = vmatpush.xpose.msra.mxu0 0.0
    %763 = vmatpush.xpose.msra.mxu0 0.0
    %764 = vmatpush.xpose.msra.mxu0 0.0
    %765 = vmatpush.xpose.msra.mxu0 0.0
    %766 = vmatpush.xpose.msra.mxu0 0.0
    %767 = vmatpush.xpose.msra.mxu0 0.0
    %768 = vmatpush.xpose.msra.mxu0 0.0
    %769 = vmatpush.xpose.msra.mxu0 0.0
    %770 = vmatpush.xpose.msra.mxu0 0.0
    %771 = vmatpush.xpose.msra.mxu0 0.0
    %772 = vmatpush.xpose.msra.mxu0 0.0
    %773 = vmatpush.xpose.msra.mxu0 0.0
    %774 = vmatpush.xpose.msra.mxu0 0.0
    %775 = vmatpush.xpose.msra.mxu0 0.0
    %776 = vmatpush.xpose.msra.mxu0 0.0
    %777 = vmatpush.xpose.msra.mxu0 %v760
    %778 = vmatmul.f32.gmra.mxu0 %v758
    %v779 = vpop.f32.mrf.mxu0
    %v780 = vadd.f32 %v184, %v779
    %781 = vdwg.mxu0
    %782 = vrot.lane.b32.xlu0 %v131, 112
    %v783 = vpop.permute.xlu0 %782
    %784 = vrot.lane.b32.xlu0 %v179, 112
    %v785 = vpop.permute.xlu0 %784
    %v786 = vsel %vm185, %v783, 0
    %v788 = vsel %vm185, %v785, 0
    %790 = vmatpush.xpose.msra.mxu0 0.0
    %791 = vmatpush.xpose.msra.mxu0 0.0
    %792 = vmatpush.xpose.msra.mxu0 0.0
    %793 = vmatpush.xpose.msra.mxu0 0.0
    %794 = vmatpush.xpose.msra.mxu0 0.0
    %795 = vmatpush.xpose.msra.mxu0 0.0
    %796 = vmatpush.xpose.msra.mxu0 0.0
    %797 = vmatpush.xpose.msra.mxu0 0.0
    %798 = vmatpush.xpose.msra.mxu0 0.0
    %799 = vmatpush.xpose.msra.mxu0 0.0
    %800 = vmatpush.xpose.msra.mxu0 0.0
    %801 = vmatpush.xpose.msra.mxu0 0.0
    %802 = vmatpush.xpose.msra.mxu0 0.0
    %803 = vmatpush.xpose.msra.mxu0 0.0
    %804 = vmatpush.xpose.msra.mxu0 0.0
    %805 = vmatpush.xpose.msra.mxu0 %v788
    %806 = vmatmul.f32.gmra.mxu0 %v786
    %v807 = vpop.f32.mrf.mxu0
    %v808 = vadd.f32 %v184, %v807
    %809 = vdwg.mxu0
    %v810 = vsel %vm185, %v724, -inf
    %811 = vmax.xlane.f32.xlu0 %v810
    %v812 = vpop.xlane.xlu0 %811
    %v813 = vsel %vm185, %v752, -inf
    %814 = vmax.xlane.f32.xlu0 %v813
    %v815 = vpop.xlane.xlu0 %814
    %v816 = vsel %vm185, %v780, -inf
    %817 = vmax.xlane.f32.xlu0 %v816
    %v818 = vpop.xlane.xlu0 %817
    %v819 = vsel %vm185, %v808, -inf
    %820 = vmax.xlane.f32.xlu0 %v819
    %v821 = vpop.xlane.xlu0 %820
    %v822 = vsub.f32 %v724, %v812
    %v823 = vsub.f32 %v752, %v815
    %v824 = vsub.f32 %v780, %v818
    %v825 = vsub.f32 %v808, %v821
    %v826 = vmul.f32 %v822, 1.442695
    %v827 = vpow.pop %v826
    %v828 = vmul.f32 %v823, 1.442695
    %v829 = vpow.pop %v828
    %v830 = vmul.f32 %v824, 1.442695
    %v831 = vpow.pop %v830
    %v832 = vmul.f32 %v825, 1.442695
    %v833 = vpow.pop %v832
    %v834 = vsel %vm185, %v827, 0.0
    %835 = vadd.xlane.f32.xlu0 %v834
    %v836 = vpop.xlane.xlu0 %835
    %v837 = vsel %vm185, %v829, 0.0
    %838 = vadd.xlane.f32.xlu0 %v837
    %v839 = vpop.xlane.xlu0 %838
    %v840 = vsel %vm185, %v831, 0.0
    %841 = vadd.xlane.f32.xlu0 %v840
    %v842 = vpop.xlane.xlu0 %841
    %v843 = vsel %vm185, %v833, 0.0
    %844 = vadd.xlane.f32.xlu0 %v843
    %v845 = vpop.xlane.xlu0 %844
    %v846 = vrcp.pop %v836
    %v847 = vrcp.pop %v839
    %v848 = vrcp.pop %v842
    %v849 = vrcp.pop %v845
    %v850 = vmul.f32 %v827, %v846
    %v851 = vmul.f32 %v829, %v847
    %v852 = vmul.f32 %v831, %v848
    %v853 = vmul.f32 %v833, %v849
    %854 = vrot.lane.b32.xlu0 %v170, 80
    %v855 = vpop.permute.xlu0 %854
    %v858 = vsel %vm185, %v850, 0
    %860 = vmatpush.msra.mxu0 0.0
    %861 = vmatpush.msra.mxu0 0.0
    %862 = vmatpush.msra.mxu0 0.0
    %863 = vmatpush.msra.mxu0 0.0
    %864 = vmatpush.msra.mxu0 0.0
    %865 = vmatpush.msra.mxu0 0.0
    %866 = vmatpush.msra.mxu0 0.0
    %867 = vmatpush.msra.mxu0 0.0
    %868 = vmatpush.msra.mxu0 0.0
    %869 = vmatpush.msra.mxu0 0.0
    %870 = vmatpush.msra.mxu0 0.0
    %871 = vmatpush.msra.mxu0 0.0
    %872 = vmatpush.msra.mxu0 0.0
    %873 = vmatpush.msra.mxu0 0.0
    %874 = vmatpush.msra.mxu0 0.0
    %875 = vmatpush.msra.mxu0 %v855
    %876 = vmatmul.f32.gmra.mxu0 %v858
    %v877 = vpop.f32.mrf.mxu0
    %v878 = vadd.f32 0.0, %v877
    %879 = vdwg.mxu0
    %880 = vrot.lane.b32.xlu0 %v173, 80
    %v881 = vpop.permute.xlu0 %880
    %v884 = vsel %vm185, %v851, 0
    %886 = vmatpush.msra.mxu0 0.0
    %887 = vmatpush.msra.mxu0 0.0
    %888 = vmatpush.msra.mxu0 0.0
    %889 = vmatpush.msra.mxu0 0.0
    %890 = vmatpush.msra.mxu0 0.0
    %891 = vmatpush.msra.mxu0 0.0
    %892 = vmatpush.msra.mxu0 0.0
    %893 = vmatpush.msra.mxu0 0.0
    %894 = vmatpush.msra.mxu0 0.0
    %895 = vmatpush.msra.mxu0 0.0
    %896 = vmatpush.msra.mxu0 0.0
    %897 = vmatpush.msra.mxu0 0.0
    %898 = vmatpush.msra.mxu0 0.0
    %899 = vmatpush.msra.mxu0 0.0
    %900 = vmatpush.msra.mxu0 0.0
    %901 = vmatpush.msra.mxu0 %v881
    %902 = vmatmul.f32.gmra.mxu0 %v884
    %v903 = vpop.f32.mrf.mxu0
    %v904 = vadd.f32 0.0, %v903
    %905 = vdwg.mxu0
    %906 = vrot.lane.b32.xlu0 %v176, 80
    %v907 = vpop.permute.xlu0 %906
    %v910 = vsel %vm185, %v852, 0
    %912 = vmatpush.msra.mxu0 0.0
    %913 = vmatpush.msra.mxu0 0.0
    %914 = vmatpush.msra.mxu0 0.0
    %915 = vmatpush.msra.mxu0 0.0
    %916 = vmatpush.msra.mxu0 0.0
    %917 = vmatpush.msra.mxu0 0.0
    %918 = vmatpush.msra.mxu0 0.0
    %919 = vmatpush.msra.mxu0 0.0
    %920 = vmatpush.msra.mxu0 0.0
    %921 = vmatpush.msra.mxu0 0.0
    %922 = vmatpush.msra.mxu0 0.0
    %923 = vmatpush.msra.mxu0 0.0
    %924 = vmatpush.msra.mxu0 0.0
    %925 = vmatpush.msra.mxu0 0.0
    %926 = vmatpush.msra.mxu0 0.0
    %927 = vmatpush.msra.mxu0 %v907
    %928 = vmatmul.f32.gmra.mxu0 %v910
    %v929 = vpop.f32.mrf.mxu0
    %v930 = vadd.f32 0.0, %v929
    %931 = vdwg.mxu0
    %932 = vrot.lane.b32.xlu0 %v179, 80
    %v933 = vpop.permute.xlu0 %932
    %v936 = vsel %vm185, %v853, 0
    %938 = vmatpush.msra.mxu0 0.0
    %939 = vmatpush.msra.mxu0 0.0
    %940 = vmatpush.msra.mxu0 0.0
    %941 = vmatpush.msra.mxu0 0.0
    %942 = vmatpush.msra.mxu0 0.0
    %943 = vmatpush.msra.mxu0 0.0
    %944 = vmatpush.msra.mxu0 0.0
    %945 = vmatpush.msra.mxu0 0.0
    %946 = vmatpush.msra.mxu0 0.0
    %947 = vmatpush.msra.mxu0 0.0
    %948 = vmatpush.msra.mxu0 0.0
    %949 = vmatpush.msra.mxu0 0.0
    %950 = vmatpush.msra.mxu0 0.0
    %951 = vmatpush.msra.mxu0 0.0
    %952 = vmatpush.msra.mxu0 0.0
    %953 = vmatpush.msra.mxu0 %v933
    %954 = vmatmul.f32.gmra.mxu0 %v936
    %v955 = vpop.f32.mrf.mxu0
    %v956 = vadd.f32 0.0, %v955
    %957 = vdwg.mxu0
    %958 = vrot.lane.b32.xlu0 %v122, 104
    %v959 = vpop.permute.xlu0 %958
    %960 = vrot.lane.b32.xlu0 %v170, 104
    %v961 = vpop.permute.xlu0 %960
    %v962 = vsel %vm185, %v959, 0
    %v964 = vsel %vm185, %v961, 0
    %966 = vmatpush.xpose.msra.mxu0 0.0
    %967 = vmatpush.xpose.msra.mxu0 0.0
    %968 = vmatpush.xpose.msra.mxu0 0.0
    %969 = vmatpush.xpose.msra.mxu0 0.0
    %970 = vmatpush.xpose.msra.mxu0 0.0
    %971 = vmatpush.xpose.msra.mxu0 0.0
    %972 = vmatpush.xpose.msra.mxu0 0.0
    %973 = vmatpush.xpose.msra.mxu0 0.0
    %974 = vmatpush.xpose.msra.mxu0 0.0
    %975 = vmatpush.xpose.msra.mxu0 0.0
    %976 = vmatpush.xpose.msra.mxu0 0.0
    %977 = vmatpush.xpose.msra.mxu0 0.0
    %978 = vmatpush.xpose.msra.mxu0 0.0
    %979 = vmatpush.xpose.msra.mxu0 0.0
    %980 = vmatpush.xpose.msra.mxu0 0.0
    %981 = vmatpush.xpose.msra.mxu0 %v964
    %982 = vmatmul.f32.gmra.mxu0 %v962
    %v983 = vpop.f32.mrf.mxu0
    %v984 = vadd.f32 %v184, %v983
    %985 = vdwg.mxu0
    %986 = vrot.lane.b32.xlu0 %v125, 104
    %v987 = vpop.permute.xlu0 %986
    %988 = vrot.lane.b32.xlu0 %v173, 104
    %v989 = vpop.permute.xlu0 %988
    %v990 = vsel %vm185, %v987, 0
    %v992 = vsel %vm185, %v989, 0
    %994 = vmatpush.xpose.msra.mxu0 0.0
    %995 = vmatpush.xpose.msra.mxu0 0.0
    %996 = vmatpush.xpose.msra.mxu0 0.0
    %997 = vmatpush.xpose.msra.mxu0 0.0
    %998 = vmatpush.xpose.msra.mxu0 0.0
    %999 = vmatpush.xpose.msra.mxu0 0.0
    %1000 = vmatpush.xpose.msra.mxu0 0.0
    %1001 = vmatpush.xpose.msra.mxu0 0.0
    %1002 = vmatpush.xpose.msra.mxu0 0.0
    %1003 = vmatpush.xpose.msra.mxu0 0.0
    %1004 = vmatpush.xpose.msra.mxu0 0.0
    %1005 = vmatpush.xpose.msra.mxu0 0.0
    %1006 = vmatpush.xpose.msra.mxu0 0.0
    %1007 = vmatpush.xpose.msra.mxu0 0.0
    %1008 = vmatpush.xpose.msra.mxu0 0.0
    %1009 = vmatpush.xpose.msra.mxu0 %v992
    %1010 = vmatmul.f32.gmra.mxu0 %v990
    %v1011 = vpop.f32.mrf.mxu0
    %v1012 = vadd.f32 %v184, %v1011
    %1013 = vdwg.mxu0
    %1014 = vrot.lane.b32.xlu0 %v128, 104
    %v1015 = vpop.permute.xlu0 %1014
    %1016 = vrot.lane.b32.xlu0 %v176, 104
    %v1017 = vpop.permute.xlu0 %1016
    %v1018 = vsel %vm185, %v1015, 0
    %v1020 = vsel %vm185, %v1017, 0
    %1022 = vmatpush.xpose.msra.mxu0 0.0
    %1023 = vmatpush.xpose.msra.mxu0 0.0
    %1024 = vmatpush.xpose.msra.mxu0 0.0
    %1025 = vmatpush.xpose.msra.mxu0 0.0
    %1026 = vmatpush.xpose.msra.mxu0 0.0
    %1027 = vmatpush.xpose.msra.mxu0 0.0
    %1028 = vmatpush.xpose.msra.mxu0 0.0
    %1029 = vmatpush.xpose.msra.mxu0 0.0
    %1030 = vmatpush.xpose.msra.mxu0 0.0
    %1031 = vmatpush.xpose.msra.mxu0 0.0
    %1032 = vmatpush.xpose.msra.mxu0 0.0
    %1033 = vmatpush.xpose.msra.mxu0 0.0
    %1034 = vmatpush.xpose.msra.mxu0 0.0
    %1035 = vmatpush.xpose.msra.mxu0 0.0
    %1036 = vmatpush.xpose.msra.mxu0 0.0
    %1037 = vmatpush.xpose.msra.mxu0 %v1020
    %1038 = vmatmul.f32.gmra.mxu0 %v1018
    %v1039 = vpop.f32.mrf.mxu0
    %v1040 = vadd.f32 %v184, %v1039
    %1041 = vdwg.mxu0
    %1042 = vrot.lane.b32.xlu0 %v131, 104
    %v1043 = vpop.permute.xlu0 %1042
    %1044 = vrot.lane.b32.xlu0 %v179, 104
    %v1045 = vpop.permute.xlu0 %1044
    %v1046 = vsel %vm185, %v1043, 0
    %v1048 = vsel %vm185, %v1045, 0
    %1050 = vmatpush.xpose.msra.mxu0 0.0
    %1051 = vmatpush.xpose.msra.mxu0 0.0
    %1052 = vmatpush.xpose.msra.mxu0 0.0
    %1053 = vmatpush.xpose.msra.mxu0 0.0
    %1054 = vmatpush.xpose.msra.mxu0 0.0
    %1055 = vmatpush.xpose.msra.mxu0 0.0
    %1056 = vmatpush.xpose.msra.mxu0 0.0
    %1057 = vmatpush.xpose.msra.mxu0 0.0
    %1058 = vmatpush.xpose.msra.mxu0 0.0
    %1059 = vmatpush.xpose.msra.mxu0 0.0
    %1060 = vmatpush.xpose.msra.mxu0 0.0
    %1061 = vmatpush.xpose.msra.mxu0 0.0
    %1062 = vmatpush.xpose.msra.mxu0 0.0
    %1063 = vmatpush.xpose.msra.mxu0 0.0
    %1064 = vmatpush.xpose.msra.mxu0 0.0
    %1065 = vmatpush.xpose.msra.mxu0 %v1048
    %1066 = vmatmul.f32.gmra.mxu0 %v1046
    %v1067 = vpop.f32.mrf.mxu0
    %v1068 = vadd.f32 %v184, %v1067
    %1069 = vdwg.mxu0
    %v1070 = vsel %vm185, %v984, -inf
    %1071 = vmax.xlane.f32.xlu0 %v1070
    %v1072 = vpop.xlane.xlu0 %1071
    %v1073 = vsel %vm185, %v1012, -inf
    %1074 = vmax.xlane.f32.xlu0 %v1073
    %v1075 = vpop.xlane.xlu0 %1074
    %v1076 = vsel %vm185, %v1040, -inf
    %1077 = vmax.xlane.f32.xlu0 %v1076
    %v1078 = vpop.xlane.xlu0 %1077
    %v1079 = vsel %vm185, %v1068, -inf
    %1080 = vmax.xlane.f32.xlu0 %v1079
    %v1081 = vpop.xlane.xlu0 %1080
    %v1082 = vsub.f32 %v984, %v1072
    %v1083 = vsub.f32 %v1012, %v1075
    %v1084 = vsub.f32 %v1040, %v1078
    %v1085 = vsub.f32 %v1068, %v1081
    %v1086 = vmul.f32 %v1082, 1.442695
    %v1087 = vpow.pop %v1086
    %v1088 = vmul.f32 %v1083, 1.442695
    %v1089 = vpow.pop %v1088
    %v1090 = vmul.f32 %v1084, 1.442695
    %v1091 = vpow.pop %v1090
    %v1092 = vmul.f32 %v1085, 1.442695
    %v1093 = vpow.pop %v1092
    %v1094 = vsel %vm185, %v1087, 0.0
    %1095 = vadd.xlane.f32.xlu0 %v1094
    %v1096 = vpop.xlane.xlu0 %1095
    %v1097 = vsel %vm185, %v1089, 0.0
    %1098 = vadd.xlane.f32.xlu0 %v1097
    %v1099 = vpop.xlane.xlu0 %1098
    %v1100 = vsel %vm185, %v1091, 0.0
    %1101 = vadd.xlane.f32.xlu0 %v1100
    %v1102 = vpop.xlane.xlu0 %1101
    %v1103 = vsel %vm185, %v1093, 0.0
    %1104 = vadd.xlane.f32.xlu0 %v1103
    %v1105 = vpop.xlane.xlu0 %1104
    %v1106 = vrcp.pop %v1096
    %v1107 = vrcp.pop %v1099
    %v1108 = vrcp.pop %v1102
    %v1109 = vrcp.pop %v1105
    %v1110 = vmul.f32 %v1087, %v1106
    %v1111 = vmul.f32 %v1089, %v1107
    %v1112 = vmul.f32 %v1091, %v1108
    %v1113 = vmul.f32 %v1093, %v1109
    %1114 = vrot.lane.b32.xlu0 %v170, 72
    %v1115 = vpop.permute.xlu0 %1114
    %v1118 = vsel %vm185, %v1110, 0
    %1120 = vmatpush.msra.mxu0 0.0
    %1121 = vmatpush.msra.mxu0 0.0
    %1122 = vmatpush.msra.mxu0 0.0
    %1123 = vmatpush.msra.mxu0 0.0
    %1124 = vmatpush.msra.mxu0 0.0
    %1125 = vmatpush.msra.mxu0 0.0
    %1126 = vmatpush.msra.mxu0 0.0
    %1127 = vmatpush.msra.mxu0 0.0
    %1128 = vmatpush.msra.mxu0 0.0
    %1129 = vmatpush.msra.mxu0 0.0
    %1130 = vmatpush.msra.mxu0 0.0
    %1131 = vmatpush.msra.mxu0 0.0
    %1132 = vmatpush.msra.mxu0 0.0
    %1133 = vmatpush.msra.mxu0 0.0
    %1134 = vmatpush.msra.mxu0 0.0
    %1135 = vmatpush.msra.mxu0 %v1115
    %1136 = vmatmul.f32.gmra.mxu0 %v1118
    %v1137 = vpop.f32.mrf.mxu0
    %v1138 = vadd.f32 0.0, %v1137
    %1139 = vdwg.mxu0
    %1140 = vrot.lane.b32.xlu0 %v173, 72
    %v1141 = vpop.permute.xlu0 %1140
    %v1144 = vsel %vm185, %v1111, 0
    %1146 = vmatpush.msra.mxu0 0.0
    %1147 = vmatpush.msra.mxu0 0.0
    %1148 = vmatpush.msra.mxu0 0.0
    %1149 = vmatpush.msra.mxu0 0.0
    %1150 = vmatpush.msra.mxu0 0.0
    %1151 = vmatpush.msra.mxu0 0.0
    %1152 = vmatpush.msra.mxu0 0.0
    %1153 = vmatpush.msra.mxu0 0.0
    %1154 = vmatpush.msra.mxu0 0.0
    %1155 = vmatpush.msra.mxu0 0.0
    %1156 = vmatpush.msra.mxu0 0.0
    %1157 = vmatpush.msra.mxu0 0.0
    %1158 = vmatpush.msra.mxu0 0.0
    %1159 = vmatpush.msra.mxu0 0.0
    %1160 = vmatpush.msra.mxu0 0.0
    %1161 = vmatpush.msra.mxu0 %v1141
    %1162 = vmatmul.f32.gmra.mxu0 %v1144
    %v1163 = vpop.f32.mrf.mxu0
    %v1164 = vadd.f32 0.0, %v1163
    %1165 = vdwg.mxu0
    %1166 = vrot.lane.b32.xlu0 %v176, 72
    %v1167 = vpop.permute.xlu0 %1166
    %v1170 = vsel %vm185, %v1112, 0
    %1172 = vmatpush.msra.mxu0 0.0
    %1173 = vmatpush.msra.mxu0 0.0
    %1174 = vmatpush.msra.mxu0 0.0
    %1175 = vmatpush.msra.mxu0 0.0
    %1176 = vmatpush.msra.mxu0 0.0
    %1177 = vmatpush.msra.mxu0 0.0
    %1178 = vmatpush.msra.mxu0 0.0
    %1179 = vmatpush.msra.mxu0 0.0
    %1180 = vmatpush.msra.mxu0 0.0
    %1181 = vmatpush.msra.mxu0 0.0
    %1182 = vmatpush.msra.mxu0 0.0
    %1183 = vmatpush.msra.mxu0 0.0
    %1184 = vmatpush.msra.mxu0 0.0
    %1185 = vmatpush.msra.mxu0 0.0
    %1186 = vmatpush.msra.mxu0 0.0
    %1187 = vmatpush.msra.mxu0 %v1167
    %1188 = vmatmul.f32.gmra.mxu0 %v1170
    %v1189 = vpop.f32.mrf.mxu0
    %v1190 = vadd.f32 0.0, %v1189
    %1191 = vdwg.mxu0
    %1192 = vrot.lane.b32.xlu0 %v179, 72
    %v1193 = vpop.permute.xlu0 %1192
    %v1196 = vsel %vm185, %v1113, 0
    %1198 = vmatpush.msra.mxu0 0.0
    %1199 = vmatpush.msra.mxu0 0.0
    %1200 = vmatpush.msra.mxu0 0.0
    %1201 = vmatpush.msra.mxu0 0.0
    %1202 = vmatpush.msra.mxu0 0.0
    %1203 = vmatpush.msra.mxu0 0.0
    %1204 = vmatpush.msra.mxu0 0.0
    %1205 = vmatpush.msra.mxu0 0.0
    %1206 = vmatpush.msra.mxu0 0.0
    %1207 = vmatpush.msra.mxu0 0.0
    %1208 = vmatpush.msra.mxu0 0.0
    %1209 = vmatpush.msra.mxu0 0.0
    %1210 = vmatpush.msra.mxu0 0.0
    %1211 = vmatpush.msra.mxu0 0.0
    %1212 = vmatpush.msra.mxu0 0.0
    %1213 = vmatpush.msra.mxu0 %v1193
    %1214 = vmatmul.f32.gmra.mxu0 %v1196
    %v1215 = vpop.f32.mrf.mxu0
    %v1216 = vadd.f32 0.0, %v1215
    %1217 = vdwg.mxu0
    %1222 = vrot.lane.b32.xlu0 %v618, 8
    %v1223 = vpop.permute.xlu0 %1222
    %1224 = vrot.lane.b32.xlu0 %v644, 8
    %v1225 = vpop.permute.xlu0 %1224
    %1226 = vrot.lane.b32.xlu0 %v670, 8
    %v1227 = vpop.permute.xlu0 %1226
    %1228 = vrot.lane.b32.xlu0 %v696, 8
    %v1229 = vpop.permute.xlu0 %1228
    %1238 = vrot.lane.b32.xlu0 %v878, 16
    %v1239 = vpop.permute.xlu0 %1238
    %1240 = vrot.lane.b32.xlu0 %v904, 16
    %v1241 = vpop.permute.xlu0 %1240
    %1242 = vrot.lane.b32.xlu0 %v930, 16
    %v1243 = vpop.permute.xlu0 %1242
    %1244 = vrot.lane.b32.xlu0 %v956, 16
    %v1245 = vpop.permute.xlu0 %1244
    %1254 = vrot.lane.b32.xlu0 %v1138, 24
    %v1255 = vpop.permute.xlu0 %1254
    %1256 = vrot.lane.b32.xlu0 %v1164, 24
    %v1257 = vpop.permute.xlu0 %1256
    %1258 = vrot.lane.b32.xlu0 %v1190, 24
    %v1259 = vpop.permute.xlu0 %1258
    %1260 = vrot.lane.b32.xlu0 %v1216, 24
    %v1261 = vpop.permute.xlu0 %1260
    %v1266 = vsel %vm185, %v358, %v1223
    %v1267 = vsel %vm185, %v384, %v1225
    %v1268 = vsel %vm185, %v410, %v1227
    %v1269 = vsel %vm185, %v436, %v1229
    %v1270 = vsel %vm91, %v1266, %v1239
    %v1271 = vsel %vm91, %v1267, %v1241
    %v1272 = vsel %vm91, %v1268, %v1243
    %v1273 = vsel %vm91, %v1269, %v1245
    %vm1274 = vcmask 195584
    %v1275 = vsel %vm1274, %v1270, %v1255
    %v1276 = vsel %vm1274, %v1271, %v1257
    %v1277 = vsel %vm1274, %v1272, %v1259
    %v1278 = vsel %vm1274, %v1273, %v1261
    %vm1279 = vcmask 261120
    %1280 = vst.msk [vmem:[#allocation10] sm:$0xff] %vm1279, %v1275
    %1281 = vst.msk [vmem:[#allocation10 + $0x8] sm:$0xff] %vm1279, %v1276
    %1282 = vst.msk [vmem:[#allocation10 + $0x10] sm:$0xff] %vm1279, %v1277
    %1283 = vst.msk [vmem:[#allocation10 + $0x18] sm:$0xff] %vm1279, %v1278
    // Predicated region
    $region34: #{tpu_custom_call.1} parent=1 // pred_check
      _
    $region35: #{tpu_custom_call.1} parent=1 // pred_check_branch
      %1285 = sbr.rel (0) target = $region37
    $region36: #{tpu_custom_call.1} parent=1 // pred_region
      %1287 = vsyncadd [#allocation4], 0
      %s1288 = sshll.u32 [#allocation10], 4
      %s1289 = int_to_ptr.vmem [resolvable:$true] %s1288
      %s1290 = sshll.u32 %s4, 4
      %s1291 = int_to_ptr.hbm [resolvable:$true] %s1290
      %1296 = dma.vmem_to_hbm [thread:$0]  %s1289, 512, %s1291, [#allocation4], 128, 128, 8
    $region37: #{tpu_custom_call.1} parent=1 // pred_fallthru
      _
    // Predicated region
    $region38: #{tpu_custom_call.1} parent=1 // pred_check
      _
    $region39: #{tpu_custom_call.1} parent=1 // pred_check_branch
      %1298 = sbr.rel (0) target = $region41
    $region40: #{tpu_custom_call.1} parent=1 // pred_region
      %1300 = dma.done [#allocation4], 512
    $region41: #{tpu_custom_call.1} parent=1 // pred_fallthru
      _
    %1301 = vsyncpa [#allocation3], 1
    %1302 = vsyncpa [#allocation6], 1
    %1303 = vsyncpa [#allocation9], 1
    %1304 = vsyncpa [#allocation4], 1

// kernel: tpu_custom_call.1
$region0: #{tpu_custom_call.1}
  #allocation0 [shape = 'u32[]', space=smem, size = 0x4, offset = 0x4, fixed_abs, tag = 'smem constant byte address 0x4 - core index']
  #allocation1 [shape = 'u32[72,128]{1,0:T(1,128)}', space=vmem, size = 0x9000, scoped, tag = 'internal scratch']
  %s0 = inlined_call_operand.hbm [shape: f32[4,8,16], index: 0, kind: input, shape index: {}]
  %s1 = inlined_call_operand.hbm [shape: f32[4,8,12], index: 1, kind: input, shape index: {}]
  %s2 = inlined_call_operand.hbm [shape: f32[16,32], index: 2, kind: input, shape index: {}]
  %s3 = inlined_call_operand.hbm [shape: f32[12,64], index: 3, kind: input, shape index: {}]
  %s4 = inlined_call_operand.hbm [shape: f32[4,8,32], index: 4, kind: output, shape index: {}]
  %s5 = sld [smem:[#allocation0]]
  $region42: #{tpu_custom_call.1} parent=0
    _
  %s7 = ssub.s32 1, %s5
  %s8 = scalar_select 0, %s7, %s5
  $region1: #{tpu_custom_call.1} parent=0
    #allocation2 [shape = 'u8[16384]{0}', space=vmem, size = 0x4000, scoped, tag = 'input window, operand 0, single buffered']
    #allocation3 [shape = 's32[1]{0}', space=sflag, size = 0x4, scoped, tag = 'scoped memory for tpu_custom_call.1']
    #allocation4 [shape = 's32[1]{0}', space=sflag, size = 0x4, scoped, tag = 'scoped memory for tpu_custom_call.1']
    #allocation5 [shape = 'u8[16384]{0}', space=vmem, size = 0x4000, scoped, tag = 'input window, operand 1, single buffered']
    #allocation6 [shape = 's32[1]{0}', space=sflag, size = 0x4, scoped, tag = 'scoped memory for tpu_custom_call.1']
    #allocation7 [shape = 'u8[8192]{0}', space=vmem, size = 0x2000, scoped, tag = 'input window, operand 2, single buffered']
    #allocation8 [shape = 'u8[8192]{0}', space=vmem, size = 0x2000, scoped, tag = 'input window, operand 3, single buffered']
    #allocation9 [shape = 's32[1]{0}', space=sflag, size = 0x4, scoped, tag = 'scoped memory for tpu_custom_call.1']
    #allocation10 [shape = 'u8[16384]{0}', space=vmem, size = 0x4000, scoped, tag = 'output window, operand 0, single buffered']
    %9 = vsyncpa [#allocation3], 0
    %10 = vsyncpa [#allocation6], 0
    %11 = vsyncpa [#allocation9], 0
    %12 = vsyncpa [#allocation4], 0
    // Predicated region
    $region2: #{tpu_custom_call.1} parent=1 // pred_check
      _
    $region3: #{tpu_custom_call.1} parent=1 // pred_check_branch
      %14 = sbr.rel (0) target = $region5
    $region4: #{tpu_custom_call.1} parent=1 // pred_region
      %16 = vsyncadd [#allocation3], 0
      %s17 = sshll.u32 %s0, 4
      %s18 = int_to_ptr.hbm [resolvable:$true] %s17
      %s19 = sshll.u32 [#allocation2], 4
      %s20 = int_to_ptr.vmem [resolvable:$true] %s19
      %25 = dma.hbm_to_vmem [thread:$0]  %s18, 512, %s20, [#allocation3], 128, 128, 8
    $region5: #{tpu_custom_call.1} parent=1 // pred_fallthru
      _
    // Predicated region
    $region6: #{tpu_custom_call.1} parent=1 // pred_check
      _
    $region7: #{tpu_custom_call.1} parent=1 // pred_check_branch
      %27 = sbr.rel (0) target = $region9
    $region8: #{tpu_custom_call.1} parent=1 // pred_region
      %29 = vsyncadd [#allocation6], 0
      %s30 = sshll.u32 %s1, 4
      %s31 = int_to_ptr.hbm [resolvable:$true] %s30
      %s32 = sshll.u32 [#allocation5], 4
      %s33 = int_to_ptr.vmem [resolvable:$true] %s32
      %38 = dma.hbm_to_vmem [thread:$0]  %s31, 512, %s33, [#allocation6], 128, 128, 8
    $region9: #{tpu_custom_call.1} parent=1 // pred_fallthru
      _
    // Predicated region
    $region10: #{tpu_custom_call.1} parent=1 // pred_check
      _
    $region11: #{tpu_custom_call.1} parent=1 // pred_check_branch
      %40 = sbr.rel (0) target = $region13
    $region12: #{tpu_custom_call.1} parent=1 // pred_region
      %42 = vsyncadd [#allocation6], 0
      %s43 = sshll.u32 %s2, 4
      %s44 = int_to_ptr.hbm [resolvable:$true] %s43
      %s45 = sshll.u32 [#allocation7], 4
      %s46 = int_to_ptr.vmem [resolvable:$true] %s45
      %51 = dma.hbm_to_vmem [thread:$0]  %s44, 256, %s46, [#allocation6], 128, 128, 8
    $region13: #{tpu_custom_call.1} parent=1 // pred_fallthru
      _
    // Predicated region
    $region14: #{tpu_custom_call.1} parent=1 // pred_check
      _
    $region15: #{tpu_custom_call.1} parent=1 // pred_check_branch
      %53 = sbr.rel (0) target = $region17
    $region16: #{tpu_custom_call.1} parent=1 // pred_region
      %55 = vsyncadd [#allocation9], 0
      %s56 = sshll.u32 %s3, 4
      %s57 = int_to_ptr.hbm [resolvable:$true] %s56
      %s58 = sshll.u32 [#allocation8], 4
      %s59 = int_to_ptr.vmem [resolvable:$true] %s58
      %64 = dma.hbm_to_vmem [thread:$0]  %s57, 256, %s59, [#allocation9], 128, 128, 8
    $region17: #{tpu_custom_call.1} parent=1 // pred_fallthru
      _
    // Predicated region
    $region18: #{tpu_custom_call.1} parent=1 // pred_check
      _
    $region19: #{tpu_custom_call.1} parent=1 // pred_check_branch
      %66 = sbr.rel (0) target = $region21
    $region20: #{tpu_custom_call.1} parent=1 // pred_region
      %68 = dma.done [#allocation3], 512
    $region21: #{tpu_custom_call.1} parent=1 // pred_fallthru
      _
    // Predicated region
    $region22: #{tpu_custom_call.1} parent=1 // pred_check
      _
    $region23: #{tpu_custom_call.1} parent=1 // pred_check_branch
      %70 = sbr.rel (0) target = $region25
    $region24: #{tpu_custom_call.1} parent=1 // pred_region
      %72 = dma.done [#allocation6], 512
    $region25: #{tpu_custom_call.1} parent=1 // pred_fallthru
      _
    // Predicated region
    $region26: #{tpu_custom_call.1} parent=1 // pred_check
      _
    $region27: #{tpu_custom_call.1} parent=1 // pred_check_branch
      %74 = sbr.rel (0) target = $region29
    $region28: #{tpu_custom_call.1} parent=1 // pred_region
      %76 = dma.done [#allocation6], 256
    $region29: #{tpu_custom_call.1} parent=1 // pred_fallthru
      _
    // Predicated region
    $region30: #{tpu_custom_call.1} parent=1 // pred_check
      _
    $region31: #{tpu_custom_call.1} parent=1 // pred_check_branch
      %78 = sbr.rel (0) target = $region33
    $region32: #{tpu_custom_call.1} parent=1 // pred_region
      %80 = dma.done [#allocation9], 256
    $region33: #{tpu_custom_call.1} parent=1 // pred_fallthru
      _
    %v81 = vld [vmem:[#allocation2] sm:$0xff]
    %v82 = vld [vmem:[#allocation2 + $0x8] sm:$0xff]
    %v83 = vld [vmem:[#allocation2 + $0x10] sm:$0xff]
    %v84 = vld [vmem:[#allocation2 + $0x18] sm:$0xff]
    %v85 = vld [vmem:[#allocation5] sm:$0xff]
    %v86 = vld [vmem:[#allocation5 + $0x8] sm:$0xff]
    %v87 = vld [vmem:[#allocation5 + $0x10] sm:$0xff]
    %v88 = vld [vmem:[#allocation5 + $0x18] sm:$0xff]
    %v89 = vld [vmem:[#allocation7] sm:$0xff]
    %v90 = vld [vmem:[#allocation7 + $0x8] sm:$0xff]
    %vm91 = vcmask 130048
    %v93 = vsel %vm91, %v81, 0
    %v96 = vsel %vm91, %v82, 0
    %v99 = vsel %vm91, %v83, 0
    %v102 = vsel %vm91, %v84, 0
    %104 = vmatpush.msra.mxu0 0.0
    %105 = vmatpush.msra.mxu0 0.0
    %106 = vmatpush.msra.mxu0 0.0
    %107 = vmatpush.msra.mxu0 0.0
    %108 = vmatpush.msra.mxu0 0.0
    %109 = vmatpush.msra.mxu0 0.0
    %110 = vmatpush.msra.mxu0 0.0
    %111 = vmatpush.msra.mxu0 0.0
    %112 = vmatpush.msra.mxu0 0.0
    %113 = vmatpush.msra.mxu0 0.0
    %114 = vmatpush.msra.mxu0 0.0
    %115 = vmatpush.msra.mxu0 0.0
    %116 = vmatpush.msra.mxu0 0.0
    %117 = vmatpush.msra.mxu0 0.0
    %118 = vmatpush.msra.mxu0 %v90
    %119 = vmatpush.msra.mxu0 %v89
    %120 = vmatmul.f32.gmra.mxu0 %v93
    %v121 = vpop.f32.mrf.mxu0
    %v122 = vadd.f32 0.0, %v121
    %123 = vmatmul.f32.gmra.mxu0 %v96
    %v124 = vpop.f32.mrf.mxu0
    %v125 = vadd.f32 0.0, %v124
    %126 = vmatmul.f32.gmra.mxu0 %v99
    %v127 = vpop.f32.mrf.mxu0
    %v128 = vadd.f32 0.0, %v127
    %129 = vmatmul.f32.gmra.mxu0 %v102
    %v130 = vpop.f32.mrf.mxu0
    %v131 = vadd.f32 0.0, %v130
    %132 = vdwg.mxu0
    %v133 = vld [vmem:[#allocation8] sm:$0xff]
    %v134 = vld [vmem:[#allocation8 + $0x8] sm:$0xf]
    %vm135 = vcmask 97280
    %v137 = vsel %vm135, %v85, 0
    %v140 = vsel %vm135, %v86, 0
    %v143 = vsel %vm135, %v87, 0
    %v146 = vsel %vm135, %v88, 0
    %vm148 = vcmask 1043456
    %v150 = vsel %vm148, %v134, 0
    %152 = vmatpush.msra.mxu0 0.0
    %153 = vmatpush.msra.mxu0 0.0
    %154 = vmatpush.msra.mxu0 0.0
    %155 = vmatpush.msra.mxu0 0.0
    %156 = vmatpush.msra.mxu0 0.0
    %157 = vmatpush.msra.mxu0 0.0
    %158 = vmatpush.msra.mxu0 0.0
    %159 = vmatpush.msra.mxu0 0.0
    %160 = vmatpush.msra.mxu0 0.0
    %161 = vmatpush.msra.mxu0 0.0
    %162 = vmatpush.msra.mxu0 0.0
    %163 = vmatpush.msra.mxu0 0.0
    %164 = vmatpush.msra.mxu0 0.0
    %165 = vmatpush.msra.mxu0 0.0
    %166 = vmatpush.msra.mxu0 %v150
    %167 = vmatpush.msra.mxu0 %v133
    %168 = vmatmul.f32.gmra.mxu0 %v137
    %v169 = vpop.f32.mrf.mxu0
    %v170 = vadd.f32 0.0, %v169
    %171 = vmatmul.f32.gmra.mxu0 %v140
    %v172 = vpop.f32.mrf.mxu0
    %v173 = vadd.f32 0.0, %v172
    %174 = vmatmul.f32.gmra.mxu0 %v143
    %v175 = vpop.f32.mrf.mxu0
    %v176 = vadd.f32 0.0, %v175
    %177 = vmatmul.f32.gmra.mxu0 %v146
    %v178 = vpop.f32.mrf.mxu0
    %v179 = vadd.f32 0.0, %v178
    %180 = vdwg.mxu0
    %v181 = vlaneseq
    %v182 = vand.u32 %v181, 127
    %vm183 = vcmp.lt.s32.totalorder %v182, 6
    %v184 = vsel %vm183, 0.0, -1e+30
    %vm185 = vcmask 64512
    %v187 = vsel %vm185, %v122, 0
    %v190 = vsel %vm185, %v170, 0
    %192 = vmatpush.xpose.msra.mxu0 0.0
    %193 = vmatpush.xpose.msra.mxu0 0.0
    %194 = vmatpush.xpose.msra.mxu0 0.0
    %195 = vmatpush.xpose.msra.mxu0 0.0
    %196 = vmatpush.xpose.msra.mxu0 0.0
    %197 = vmatpush.xpose.msra.mxu0 0.0
    %198 = vmatpush.xpose.msra.mxu0 0.0
    %199 = vmatpush.xpose.msra.mxu0 0.0
    %200 = vmatpush.xpose.msra.mxu0 0.0
    %201 = vmatpush.xpose.msra.mxu0 0.0
    %202 = vmatpush.xpose.msra.mxu0 0.0
    %203 = vmatpush.xpose.msra.mxu0 0.0
    %204 = vmatpush.xpose.msra.mxu0 0.0
    %205 = vmatpush.xpose.msra.mxu0 0.0
    %206 = vmatpush.xpose.msra.mxu0 0.0
    %207 = vmatpush.xpose.msra.mxu0 %v190
    %208 = vmatmul.f32.gmra.mxu0 %v187
    %v209 = vpop.f32.mrf.mxu0
    %v210 = vadd.f32 %v184, %v209
    %211 = vdwg.mxu0
    %v213 = vsel %vm185, %v125, 0
    %v216 = vsel %vm185, %v173, 0
    %218 = vmatpush.xpose.msra.mxu0 0.0
    %219 = vmatpush.xpose.msra.mxu0 0.0
    %220 = vmatpush.xpose.msra.mxu0 0.0
    %221 = vmatpush.xpose.msra.mxu0 0.0
    %222 = vmatpush.xpose.msra.mxu0 0.0
    %223 = vmatpush.xpose.msra.mxu0 0.0
    %224 = vmatpush.xpose.msra.mxu0 0.0
    %225 = vmatpush.xpose.msra.mxu0 0.0
    %226 = vmatpush.xpose.msra.mxu0 0.0
    %227 = vmatpush.xpose.msra.mxu0 0.0
    %228 = vmatpush.xpose.msra.mxu0 0.0
    %229 = vmatpush.xpose.msra.mxu0 0.0
    %230 = vmatpush.xpose.msra.mxu0 0.0
    %231 = vmatpush.xpose.msra.mxu0 0.0
    %232 = vmatpush.xpose.msra.mxu0 0.0
    %233 = vmatpush.xpose.msra.mxu0 %v216
    %234 = vmatmul.f32.gmra.mxu0 %v213
    %v235 = vpop.f32.mrf.mxu0
    %v236 = vadd.f32 %v184, %v235
    %237 = vdwg.mxu0
    %v239 = vsel %vm185, %v128, 0
    %v242 = vsel %vm185, %v176, 0
    %244 = vmatpush.xpose.msra.mxu0 0.0
    %245 = vmatpush.xpose.msra.mxu0 0.0
    %246 = vmatpush.xpose.msra.mxu0 0.0
    %247 = vmatpush.xpose.msra.mxu0 0.0
    %248 = vmatpush.xpose.msra.mxu0 0.0
    %249 = vmatpush.xpose.msra.mxu0 0.0
    %250 = vmatpush.xpose.msra.mxu0 0.0
    %251 = vmatpush.xpose.msra.mxu0 0.0
    %252 = vmatpush.xpose.msra.mxu0 0.0
    %253 = vmatpush.xpose.msra.mxu0 0.0
    %254 = vmatpush.xpose.msra.mxu0 0.0
    %255 = vmatpush.xpose.msra.mxu0 0.0
    %256 = vmatpush.xpose.msra.mxu0 0.0
    %257 = vmatpush.xpose.msra.mxu0 0.0
    %258 = vmatpush.xpose.msra.mxu0 0.0
    %259 = vmatpush.xpose.msra.mxu0 %v242
    %260 = vmatmul.f32.gmra.mxu0 %v239
    %v261 = vpop.f32.mrf.mxu0
    %v262 = vadd.f32 %v184, %v261
    %263 = vdwg.mxu0
    %v265 = vsel %vm185, %v131, 0
    %v268 = vsel %vm185, %v179, 0
    %270 = vmatpush.xpose.msra.mxu0 0.0
    %271 = vmatpush.xpose.msra.mxu0 0.0
    %272 = vmatpush.xpose.msra.mxu0 0.0
    %273 = vmatpush.xpose.msra.mxu0 0.0
    %274 = vmatpush.xpose.msra.mxu0 0.0
    %275 = vmatpush.xpose.msra.mxu0 0.0
    %276 = vmatpush.xpose.msra.mxu0 0.0
    %277 = vmatpush.xpose.msra.mxu0 0.0
    %278 = vmatpush.xpose.msra.mxu0 0.0
    %279 = vmatpush.xpose.msra.mxu0 0.0
    %280 = vmatpush.xpose.msra.mxu0 0.0
    %281 = vmatpush.xpose.msra.mxu0 0.0
    %282 = vmatpush.xpose.msra.mxu0 0.0
    %283 = vmatpush.xpose.msra.mxu0 0.0
    %284 = vmatpush.xpose.msra.mxu0 0.0
    %285 = vmatpush.xpose.msra.mxu0 %v268
    %286 = vmatmul.f32.gmra.mxu0 %v265
    %v287 = vpop.f32.mrf.mxu0
    %v288 = vadd.f32 %v184, %v287
    %289 = vdwg.mxu0
    %v290 = vsel %vm185, %v210, -inf
    %291 = vmax.xlane.f32.xlu0 %v290
    %v292 = vpop.xlane.xlu0 %291
    %v293 = vsel %vm185, %v236, -inf
    %294 = vmax.xlane.f32.xlu0 %v293
    %v295 = vpop.xlane.xlu0 %294
    %v296 = vsel %vm185, %v262, -inf
    %297 = vmax.xlane.f32.xlu0 %v296
    %v298 = vpop.xlane.xlu0 %297
    %v299 = vsel %vm185, %v288, -inf
    %300 = vmax.xlane.f32.xlu0 %v299
    %v301 = vpop.xlane.xlu0 %300
    %v302 = vsub.f32 %v210, %v292
    %v303 = vsub.f32 %v236, %v295
    %v304 = vsub.f32 %v262, %v298
    %v305 = vsub.f32 %v288, %v301
    %v306 = vmul.f32 %v302, 1.442695
    %v307 = vpow.pop %v306
    %v308 = vmul.f32 %v303, 1.442695
    %v309 = vpow.pop %v308
    %v310 = vmul.f32 %v304, 1.442695
    %v311 = vpow.pop %v310
    %v312 = vmul.f32 %v305, 1.442695
    %v313 = vpow.pop %v312
    %v314 = vsel %vm185, %v307, 0.0
    %315 = vadd.xlane.f32.xlu0 %v314
    %v316 = vpop.xlane.xlu0 %315
    %v317 = vsel %vm185, %v309, 0.0
    %318 = vadd.xlane.f32.xlu0 %v317
    %v319 = vpop.xlane.xlu0 %318
    %v320 = vsel %vm185, %v311, 0.0
    %321 = vadd.xlane.f32.xlu0 %v320
    %v322 = vpop.xlane.xlu0 %321
    %v323 = vsel %vm185, %v313, 0.0
    %324 = vadd.xlane.f32.xlu0 %v323
    %v325 = vpop.xlane.xlu0 %324
    %v326 = vrcp.pop %v316
    %v327 = vrcp.pop %v319
    %v328 = vrcp.pop %v322
    %v329 = vrcp.pop %v325
    %v330 = vmul.f32 %v307, %v326
    %v331 = vmul.f32 %v309, %v327
    %v332 = vmul.f32 %v311, %v328
    %v333 = vmul.f32 %v313, %v329
    %334 = vrot.lane.b32.xlu0 %v170, 96
    %v335 = vpop.permute.xlu0 %334
    %v338 = vsel %vm185, %v330, 0
    %340 = vmatpush.msra.mxu0 0.0
    %341 = vmatpush.msra.mxu0 0.0
    %342 = vmatpush.msra.mxu0 0.0
    %343 = vmatpush.msra.mxu0 0.0
    %344 = vmatpush.msra.mxu0 0.0
    %345 = vmatpush.msra.mxu0 0.0
    %346 = vmatpush.msra.mxu0 0.0
    %347 = vmatpush.msra.mxu0 0.0
    %348 = vmatpush.msra.mxu0 0.0
    %349 = vmatpush.msra.mxu0 0.0
    %350 = vmatpush.msra.mxu0 0.0
    %351 = vmatpush.msra.mxu0 0.0
    %352 = vmatpush.msra.mxu0 0.0
    %353 = vmatpush.msra.mxu0 0.0
    %354 = vmatpush.msra.mxu0 0.0
    %355 = vmatpush.msra.mxu0 %v335
    %356 = vmatmul.f32.gmra.mxu0 %v338
    %v357 = vpop.f32.mrf.mxu0
    %v358 = vadd.f32 0.0, %v357
    %359 = vdwg.mxu0
    %360 = vrot.lane.b32.xlu0 %v173, 96
    %v361 = vpop.permute.xlu0 %360
    %v364 = vsel %vm185, %v331, 0
    %366 = vmatpush.msra.mxu0 0.0
    %367 = vmatpush.msra.mxu0 0.0
    %368 = vmatpush.msra.mxu0 0.0
    %369 = vmatpush.msra.mxu0 0.0
    %370 = vmatpush.msra.mxu0 0.0
    %371 = vmatpush.msra.mxu0 0.0
    %372 = vmatpush.msra.mxu0 0.0
    %373 = vmatpush.msra.mxu0 0.0
    %374 = vmatpush.msra.mxu0 0.0
    %375 = vmatpush.msra.mxu0 0.0
    %376 = vmatpush.msra.mxu0 0.0
    %377 = vmatpush.msra.mxu0 0.0
    %378 = vmatpush.msra.mxu0 0.0
    %379 = vmatpush.msra.mxu0 0.0
    %380 = vmatpush.msra.mxu0 0.0
    %381 = vmatpush.msra.mxu0 %v361
    %382 = vmatmul.f32.gmra.mxu0 %v364
    %v383 = vpop.f32.mrf.mxu0
    %v384 = vadd.f32 0.0, %v383
    %385 = vdwg.mxu0
    %386 = vrot.lane.b32.xlu0 %v176, 96
    %v387 = vpop.permute.xlu0 %386
    %v390 = vsel %vm185, %v332, 0
    %392 = vmatpush.msra.mxu0 0.0
    %393 = vmatpush.msra.mxu0 0.0
    %394 = vmatpush.msra.mxu0 0.0
    %395 = vmatpush.msra.mxu0 0.0
    %396 = vmatpush.msra.mxu0 0.0
    %397 = vmatpush.msra.mxu0 0.0
    %398 = vmatpush.msra.mxu0 0.0
    %399 = vmatpush.msra.mxu0 0.0
    %400 = vmatpush.msra.mxu0 0.0
    %401 = vmatpush.msra.mxu0 0.0
    %402 = vmatpush.msra.mxu0 0.0
    %403 = vmatpush.msra.mxu0 0.0
    %404 = vmatpush.msra.mxu0 0.0
    %405 = vmatpush.msra.mxu0 0.0
    %406 = vmatpush.msra.mxu0 0.0
    %407 = vmatpush.msra.mxu0 %v387
    %408 = vmatmul.f32.gmra.mxu0 %v390
    %v409 = vpop.f32.mrf.mxu0
    %v410 = vadd.f32 0.0, %v409
    %411 = vdwg.mxu0
    %412 = vrot.lane.b32.xlu0 %v179, 96
    %v413 = vpop.permute.xlu0 %412
    %v416 = vsel %vm185, %v333, 0
    %418 = vmatpush.msra.mxu0 0.0
    %419 = vmatpush.msra.mxu0 0.0
    %420 = vmatpush.msra.mxu0 0.0
    %421 = vmatpush.msra.mxu0 0.0
    %422 = vmatpush.msra.mxu0 0.0
    %423 = vmatpush.msra.mxu0 0.0
    %424 = vmatpush.msra.mxu0 0.0
    %425 = vmatpush.msra.mxu0 0.0
    %426 = vmatpush.msra.mxu0 0.0
    %427 = vmatpush.msra.mxu0 0.0
    %428 = vmatpush.msra.mxu0 0.0
    %429 = vmatpush.msra.mxu0 0.0
    %430 = vmatpush.msra.mxu0 0.0
    %431 = vmatpush.msra.mxu0 0.0
    %432 = vmatpush.msra.mxu0 0.0
    %433 = vmatpush.msra.mxu0 %v413
    %434 = vmatmul.f32.gmra.mxu0 %v416
    %v435 = vpop.f32.mrf.mxu0
    %v436 = vadd.f32 0.0, %v435
    %437 = vdwg.mxu0
    %438 = vrot.lane.b32.xlu0 %v122, 120
    %v439 = vpop.permute.xlu0 %438
    %440 = vrot.lane.b32.xlu0 %v170, 120
    %v441 = vpop.permute.xlu0 %440
    %v442 = vsel %vm185, %v439, 0
    %v444 = vsel %vm185, %v441, 0
    %446 = vmatpush.xpose.msra.mxu0 0.0
    %447 = vmatpush.xpose.msra.mxu0 0.0
    %448 = vmatpush.xpose.msra.mxu0 0.0
    %449 = vmatpush.xpose.msra.mxu0 0.0
    %450 = vmatpush.xpose.msra.mxu0 0.0
    %451 = vmatpush.xpose.msra.mxu0 0.0
    %452 = vmatpush.xpose.msra.mxu0 0.0
    %453 = vmatpush.xpose.msra.mxu0 0.0
    %454 = vmatpush.xpose.msra.mxu0 0.0
    %455 = vmatpush.xpose.msra.mxu0 0.0
    %456 = vmatpush.xpose.msra.mxu0 0.0
    %457 = vmatpush.xpose.msra.mxu0 0.0
    %458 = vmatpush.xpose.msra.mxu0 0.0
    %459 = vmatpush.xpose.msra.mxu0 0.0
    %460 = vmatpush.xpose.msra.mxu0 0.0
    %461 = vmatpush.xpose.msra.mxu0 %v444
    %462 = vmatmul.f32.gmra.mxu0 %v442
    %v463 = vpop.f32.mrf.mxu0
    %v464 = vadd.f32 %v184, %v463
    %465 = vdwg.mxu0
    %466 = vrot.lane.b32.xlu0 %v125, 120
    %v467 = vpop.permute.xlu0 %466
    %468 = vrot.lane.b32.xlu0 %v173, 120
    %v469 = vpop.permute.xlu0 %468
    %v470 = vsel %vm185, %v467, 0
    %v472 = vsel %vm185, %v469, 0
    %474 = vmatpush.xpose.msra.mxu0 0.0
    %475 = vmatpush.xpose.msra.mxu0 0.0
    %476 = vmatpush.xpose.msra.mxu0 0.0
    %477 = vmatpush.xpose.msra.mxu0 0.0
    %478 = vmatpush.xpose.msra.mxu0 0.0
    %479 = vmatpush.xpose.msra.mxu0 0.0
    %480 = vmatpush.xpose.msra.mxu0 0.0
    %481 = vmatpush.xpose.msra.mxu0 0.0
    %482 = vmatpush.xpose.msra.mxu0 0.0
    %483 = vmatpush.xpose.msra.mxu0 0.0
    %484 = vmatpush.xpose.msra.mxu0 0.0
    %485 = vmatpush.xpose.msra.mxu0 0.0
    %486 = vmatpush.xpose.msra.mxu0 0.0
    %487 = vmatpush.xpose.msra.mxu0 0.0
    %488 = vmatpush.xpose.msra.mxu0 0.0
    %489 = vmatpush.xpose.msra.mxu0 %v472
    %490 = vmatmul.f32.gmra.mxu0 %v470
    %v491 = vpop.f32.mrf.mxu0
    %v492 = vadd.f32 %v184, %v491
    %493 = vdwg.mxu0
    %494 = vrot.lane.b32.xlu0 %v128, 120
    %v495 = vpop.permute.xlu0 %494
    %496 = vrot.lane.b32.xlu0 %v176, 120
    %v497 = vpop.permute.xlu0 %496
    %v498 = vsel %vm185, %v495, 0
    %v500 = vsel %vm185, %v497, 0
    %502 = vmatpush.xpose.msra.mxu0 0.0
    %503 = vmatpush.xpose.msra.mxu0 0.0
    %504 = vmatpush.xpose.msra.mxu0 0.0
    %505 = vmatpush.xpose.msra.mxu0 0.0
    %506 = vmatpush.xpose.msra.mxu0 0.0
    %507 = vmatpush.xpose.msra.mxu0 0.0
    %508 = vmatpush.xpose.msra.mxu0 0.0
    %509 = vmatpush.xpose.msra.mxu0 0.0
    %510 = vmatpush.xpose.msra.mxu0 0.0
    %511 = vmatpush.xpose.msra.mxu0 0.0
    %512 = vmatpush.xpose.msra.mxu0 0.0
    %513 = vmatpush.xpose.msra.mxu0 0.0
    %514 = vmatpush.xpose.msra.mxu0 0.0
    %515 = vmatpush.xpose.msra.mxu0 0.0
    %516 = vmatpush.xpose.msra.mxu0 0.0
    %517 = vmatpush.xpose.msra.mxu0 %v500
    %518 = vmatmul.f32.gmra.mxu0 %v498
    %v519 = vpop.f32.mrf.mxu0
    %v520 = vadd.f32 %v184, %v519
    %521 = vdwg.mxu0
    %522 = vrot.lane.b32.xlu0 %v131, 120
    %v523 = vpop.permute.xlu0 %522
    %524 = vrot.lane.b32.xlu0 %v179, 120
    %v525 = vpop.permute.xlu0 %524
    %v526 = vsel %vm185, %v523, 0
    %v528 = vsel %vm185, %v525, 0
    %530 = vmatpush.xpose.msra.mxu0 0.0
    %531 = vmatpush.xpose.msra.mxu0 0.0
    %532 = vmatpush.xpose.msra.mxu0 0.0
    %533 = vmatpush.xpose.msra.mxu0 0.0
    %534 = vmatpush.xpose.msra.mxu0 0.0
    %535 = vmatpush.xpose.msra.mxu0 0.0
    %536 = vmatpush.xpose.msra.mxu0 0.0
    %537 = vmatpush.xpose.msra.mxu0 0.0
    %538 = vmatpush.xpose.msra.mxu0 0.0
    %539 = vmatpush.xpose.msra.mxu0 0.0
    %540 = vmatpush.xpose.msra.mxu0 0.0
    %541 = vmatpush.xpose.msra.mxu0 0.0
    %542 = vmatpush.xpose.msra.mxu0 0.0
    %543 = vmatpush.xpose.msra.mxu0 0.0
    %544 = vmatpush.xpose.msra.mxu0 0.0
    %545 = vmatpush.xpose.msra.mxu0 %v528
    %546 = vmatmul.f32.gmra.mxu0 %v526
    %v547 = vpop.f32.mrf.mxu0
    %v548 = vadd.f32 %v184, %v547
    %549 = vdwg.mxu0
    %v550 = vsel %vm185, %v464, -inf
    %551 = vmax.xlane.f32.xlu0 %v550
    %v552 = vpop.xlane.xlu0 %551
    %v553 = vsel %vm185, %v492, -inf
    %554 = vmax.xlane.f32.xlu0 %v553
    %v555 = vpop.xlane.xlu0 %554
    %v556 = vsel %vm185, %v520, -inf
    %557 = vmax.xlane.f32.xlu0 %v556
    %v558 = vpop.xlane.xlu0 %557
    %v559 = vsel %vm185, %v548, -inf
    %560 = vmax.xlane.f32.xlu0 %v559
    %v561 = vpop.xlane.xlu0 %560
    %v562 = vsub.f32 %v464, %v552
    %v563 = vsub.f32 %v492, %v555
    %v564 = vsub.f32 %v520, %v558
    %v565 = vsub.f32 %v548, %v561
    %v566 = vmul.f32 %v562, 1.442695
    %v567 = vpow.pop %v566
    %v568 = vmul.f32 %v563, 1.442695
    %v569 = vpow.pop %v568
    %v570 = vmul.f32 %v564, 1.442695
    %v571 = vpow.pop %v570
    %v572 = vmul.f32 %v565, 1.442695
    %v573 = vpow.pop %v572
    %v574 = vsel %vm185, %v567, 0.0
    %575 = vadd.xlane.f32.xlu0 %v574
    %v576 = vpop.xlane.xlu0 %575
    %v577 = vsel %vm185, %v569, 0.0
    %578 = vadd.xlane.f32.xlu0 %v577
    %v579 = vpop.xlane.xlu0 %578
    %v580 = vsel %vm185, %v571, 0.0
    %581 = vadd.xlane.f32.xlu0 %v580
    %v582 = vpop.xlane.xlu0 %581
    %v583 = vsel %vm185, %v573, 0.0
    %584 = vadd.xlane.f32.xlu0 %v583
    %v585 = vpop.xlane.xlu0 %584
    %v586 = vrcp.pop %v576
    %v587 = vrcp.pop %v579
    %v588 = vrcp.pop %v582
    %v589 = vrcp.pop %v585
    %v590 = vmul.f32 %v567, %v586
    %v591 = vmul.f32 %v569, %v587
    %v592 = vmul.f32 %v571, %v588
    %v593 = vmul.f32 %v573, %v589
    %594 = vrot.lane.b32.xlu0 %v170, 88
    %v595 = vpop.permute.xlu0 %594
    %v598 = vsel %vm185, %v590, 0
    %600 = vmatpush.msra.mxu0 0.0
    %601 = vmatpush.msra.mxu0 0.0
    %602 = vmatpush.msra.mxu0 0.0
    %603 = vmatpush.msra.mxu0 0.0
    %604 = vmatpush.msra.mxu0 0.0
    %605 = vmatpush.msra.mxu0 0.0
    %606 = vmatpush.msra.mxu0 0.0
    %607 = vmatpush.msra.mxu0 0.0
    %608 = vmatpush.msra.mxu0 0.0
    %609 = vmatpush.msra.mxu0 0.0
    %610 = vmatpush.msra.mxu0 0.0
    %611 = vmatpush.msra.mxu0 0.0
    %612 = vmatpush.msra.mxu0 0.0
    %613 = vmatpush.msra.mxu0 0.0
    %614 = vmatpush.msra.mxu0 0.0
    %615 = vmatpush.msra.mxu0 %v595
    %616 = vmatmul.f32.gmra.mxu0 %v598
    %v617 = vpop.f32.mrf.mxu0
    %v618 = vadd.f32 0.0, %v617
    %619 = vdwg.mxu0
    %620 = vrot.lane.b32.xlu0 %v173, 88
    %v621 = vpop.permute.xlu0 %620
    %v624 = vsel %vm185, %v591, 0
    %626 = vmatpush.msra.mxu0 0.0
    %627 = vmatpush.msra.mxu0 0.0
    %628 = vmatpush.msra.mxu0 0.0
    %629 = vmatpush.msra.mxu0 0.0
    %630 = vmatpush.msra.mxu0 0.0
    %631 = vmatpush.msra.mxu0 0.0
    %632 = vmatpush.msra.mxu0 0.0
    %633 = vmatpush.msra.mxu0 0.0
    %634 = vmatpush.msra.mxu0 0.0
    %635 = vmatpush.msra.mxu0 0.0
    %636 = vmatpush.msra.mxu0 0.0
    %637 = vmatpush.msra.mxu0 0.0
    %638 = vmatpush.msra.mxu0 0.0
    %639 = vmatpush.msra.mxu0 0.0
    %640 = vmatpush.msra.mxu0 0.0
    %641 = vmatpush.msra.mxu0 %v621
    %642 = vmatmul.f32.gmra.mxu0 %v624
    %v643 = vpop.f32.mrf.mxu0
    %v644 = vadd.f32 0.0, %v643
    %645 = vdwg.mxu0
    %646 = vrot.lane.b32.xlu0 %v176, 88
    %v647 = vpop.permute.xlu0 %646
    %v650 = vsel %vm185, %v592, 0
    %652 = vmatpush.msra.mxu0 0.0
    %653 = vmatpush.msra.mxu0 0.0
    %654 = vmatpush.msra.mxu0 0.0
    %655 = vmatpush.msra.mxu0 0.0
    %656 = vmatpush.msra.mxu0 0.0
    %657 = vmatpush.msra.mxu0 0.0
    %658 = vmatpush.msra.mxu0 0.0
    %659 = vmatpush.msra.mxu0 0.0
    %660 = vmatpush.msra.mxu0 0.0
    %661 = vmatpush.msra.mxu0 0.0
    %662 = vmatpush.msra.mxu0 0.0
    %663 = vmatpush.msra.mxu0 0.0
    %664 = vmatpush.msra.mxu0 0.0
    %665 = vmatpush.msra.mxu0 0.0
    %666 = vmatpush.msra.mxu0 0.0
    %667 = vmatpush.msra.mxu0 %v647
    %668 = vmatmul.f32.gmra.mxu0 %v650
    %v669 = vpop.f32.mrf.mxu0
    %v670 = vadd.f32 0.0, %v669
    %671 = vdwg.mxu0
    %672 = vrot.lane.b32.xlu0 %v179, 88
    %v673 = vpop.permute.xlu0 %672
    %v676 = vsel %vm185, %v593, 0
    %678 = vmatpush.msra.mxu0 0.0
    %679 = vmatpush.msra.mxu0 0.0
    %680 = vmatpush.msra.mxu0 0.0
    %681 = vmatpush.msra.mxu0 0.0
    %682 = vmatpush.msra.mxu0 0.0
    %683 = vmatpush.msra.mxu0 0.0
    %684 = vmatpush.msra.mxu0 0.0
    %685 = vmatpush.msra.mxu0 0.0
    %686 = vmatpush.msra.mxu0 0.0
    %687 = vmatpush.msra.mxu0 0.0
    %688 = vmatpush.msra.mxu0 0.0
    %689 = vmatpush.msra.mxu0 0.0
    %690 = vmatpush.msra.mxu0 0.0
    %691 = vmatpush.msra.mxu0 0.0
    %692 = vmatpush.msra.mxu0 0.0
    %693 = vmatpush.msra.mxu0 %v673
    %694 = vmatmul.f32.gmra.mxu0 %v676
    %v695 = vpop.f32.mrf.mxu0
    %v696 = vadd.f32 0.0, %v695
    %697 = vdwg.mxu0
    %698 = vrot.lane.b32.xlu0 %v122, 112
    %v699 = vpop.permute.xlu0 %698
    %700 = vrot.lane.b32.xlu0 %v170, 112
    %v701 = vpop.permute.xlu0 %700
    %v702 = vsel %vm185, %v699, 0
    %v704 = vsel %vm185, %v701, 0
    %706 = vmatpush.xpose.msra.mxu0 0.0
    %707 = vmatpush.xpose.msra.mxu0 0.0
    %708 = vmatpush.xpose.msra.mxu0 0.0
    %709 = vmatpush.xpose.msra.mxu0 0.0
    %710 = vmatpush.xpose.msra.mxu0 0.0
    %711 = vmatpush.xpose.msra.mxu0 0.0
    %712 = vmatpush.xpose.msra.mxu0 0.0
    %713 = vmatpush.xpose.msra.mxu0 0.0
    %714 = vmatpush.xpose.msra.mxu0 0.0
    %715 = vmatpush.xpose.msra.mxu0 0.0
    %716 = vmatpush.xpose.msra.mxu0 0.0
    %717 = vmatpush.xpose.msra.mxu0 0.0
    %718 = vmatpush.xpose.msra.mxu0 0.0
    %719 = vmatpush.xpose.msra.mxu0 0.0
    %720 = vmatpush.xpose.msra.mxu0 0.0
    %721 = vmatpush.xpose.msra.mxu0 %v704
    %722 = vmatmul.f32.gmra.mxu0 %v702
    %v723 = vpop.f32.mrf.mxu0
    %v724 = vadd.f32 %v184, %v723
    %725 = vdwg.mxu0
    %726 = vrot.lane.b32.xlu0 %v125, 112
    %v727 = vpop.permute.xlu0 %726
    %728 = vrot.lane.b32.xlu0 %v173, 112
    %v729 = vpop.permute.xlu0 %728
    %v730 = vsel %vm185, %v727, 0
    %v732 = vsel %vm185, %v729, 0
    %734 = vmatpush.xpose.msra.mxu0 0.0
    %735 = vmatpush.xpose.msra.mxu0 0.0
    %736 = vmatpush.xpose.msra.mxu0 0.0
    %737 = vmatpush.xpose.msra.mxu0 0.0
    %738 = vmatpush.xpose.msra.mxu0 0.0
    %739 = vmatpush.xpose.msra.mxu0 0.0
    %740 = vmatpush.xpose.msra.mxu0 0.0
    %741 = vmatpush.xpose.msra.mxu0 0.0
    %742 = vmatpush.xpose.msra.mxu0 0.0
    %743 = vmatpush.xpose.msra.mxu0 0.0
    %744 = vmatpush.xpose.msra.mxu0 0.0
    %745 = vmatpush.xpose.msra.mxu0 0.0
    %746 = vmatpush.xpose.msra.mxu0 0.0
    %747 = vmatpush.xpose.msra.mxu0 0.0
    %748 = vmatpush.xpose.msra.mxu0 0.0
    %749 = vmatpush.xpose.msra.mxu0 %v732
    %750 = vmatmul.f32.gmra.mxu0 %v730
    %v751 = vpop.f32.mrf.mxu0
    %v752 = vadd.f32 %v184, %v751
    %753 = vdwg.mxu0
    %754 = vrot.lane.b32.xlu0 %v128, 112
    %v755 = vpop.permute.xlu0 %754
    %756 = vrot.lane.b32.xlu0 %v176, 112
    %v757 = vpop.permute.xlu0 %756
    %v758 = vsel %vm185, %v755, 0
    %v760 = vsel %vm185, %v757, 0
    %762 = vmatpush.xpose.msra.mxu0 0.0
    %763 = vmatpush.xpose.msra.mxu0 0.0
    %764 = vmatpush.xpose.msra.mxu0 0.0
    %765 = vmatpush.xpose.msra.mxu0 0.0
    %766 = vmatpush.xpose.msra.mxu0 0.0
    %767 = vmatpush.xpose.msra.mxu0 0.0
    %768 = vmatpush.xpose.msra.mxu0 0.0
    %769 = vmatpush.xpose.msra.mxu0 0.0
    %770 = vmatpush.xpose.msra.mxu0 0.0
    %771 = vmatpush.xpose.msra.mxu0 0.0
    %772 = vmatpush.xpose.msra.mxu0 0.0
    %773 = vmatpush.xpose.msra.mxu0 0.0
    %774 = vmatpush.xpose.msra.mxu0 0.0
    %775 = vmatpush.xpose.msra.mxu0 0.0
    %776 = vmatpush.xpose.msra.mxu0 0.0
    %777 = vmatpush.xpose.msra.mxu0 %v760
    %778 = vmatmul.f32.gmra.mxu0 %v758
    %v779 = vpop.f32.mrf.mxu0
    %v780 = vadd.f32 %v184, %v779
    %781 = vdwg.mxu0
    %782 = vrot.lane.b32.xlu0 %v131, 112
    %v783 = vpop.permute.xlu0 %782
    %784 = vrot.lane.b32.xlu0 %v179, 112
    %v785 = vpop.permute.xlu0 %784
    %v786 = vsel %vm185, %v783, 0
    %v788 = vsel %vm185, %v785, 0
    %790 = vmatpush.xpose.msra.mxu0 0.0
    %791 = vmatpush.xpose.msra.mxu0 0.0
    %792 = vmatpush.xpose.msra.mxu0 0.0
    %793 = vmatpush.xpose.msra.mxu0 0.0
    %794 = vmatpush.xpose.msra.mxu0 0.0
    %795 = vmatpush.xpose.msra.mxu0 0.0
    %796 = vmatpush.xpose.msra.mxu0 0.0
    %797 = vmatpush.xpose.msra.mxu0 0.0
    %798 = vmatpush.xpose.msra.mxu0 0.0
    %799 = vmatpush.xpose.msra.mxu0 0.0
    %800 = vmatpush.xpose.msra.mxu0 0.0
    %801 = vmatpush.xpose.msra.mxu0 0.0
    %802 = vmatpush.xpose.msra.mxu0 0.0
    %803 = vmatpush.xpose.msra.mxu0 0.0
    %804 = vmatpush.xpose.msra.mxu0 0.0
    %805 = vmatpush.xpose.msra.mxu0 %v788
    %806 = vmatmul.f32.gmra.mxu0 %v786
    %v807 = vpop.f32.mrf.mxu0
    %v808 = vadd.f32 %v184, %v807
    %809 = vdwg.mxu0
    %v810 = vsel %vm185, %v724, -inf
    %811 = vmax.xlane.f32.xlu0 %v810
    %v812 = vpop.xlane.xlu0 %811
    %v813 = vsel %vm185, %v752, -inf
    %814 = vmax.xlane.f32.xlu0 %v813
    %v815 = vpop.xlane.xlu0 %814
    %v816 = vsel %vm185, %v780, -inf
    %817 = vmax.xlane.f32.xlu0 %v816
    %v818 = vpop.xlane.xlu0 %817
    %v819 = vsel %vm185, %v808, -inf
    %820 = vmax.xlane.f32.xlu0 %v819
    %v821 = vpop.xlane.xlu0 %820
    %v822 = vsub.f32 %v724, %v812
    %v823 = vsub.f32 %v752, %v815
    %v824 = vsub.f32 %v780, %v818
    %v825 = vsub.f32 %v808, %v821
    %v826 = vmul.f32 %v822, 1.442695
    %v827 = vpow.pop %v826
    %v828 = vmul.f32 %v823, 1.442695
    %v829 = vpow.pop %v828
    %v830 = vmul.f32 %v824, 1.442695
    %v831 = vpow.pop %v830
    %v832 = vmul.f32 %v825, 1.442695
    %v833 = vpow.pop %v832
    %v834 = vsel %vm185, %v827, 0.0
    %835 = vadd.xlane.f32.xlu0 %v834
    %v836 = vpop.xlane.xlu0 %835
    %v837 = vsel %vm185, %v829, 0.0
    %838 = vadd.xlane.f32.xlu0 %v837
    %v839 = vpop.xlane.xlu0 %838
    %v840 = vsel %vm185, %v831, 0.0
    %841 = vadd.xlane.f32.xlu0 %v840
    %v842 = vpop.xlane.xlu0 %841
    %v843 = vsel %vm185, %v833, 0.0
    %844 = vadd.xlane.f32.xlu0 %v843
    %v845 = vpop.xlane.xlu0 %844
    %v846 = vrcp.pop %v836
    %v847 = vrcp.pop %v839
    %v848 = vrcp.pop %v842
    %v849 = vrcp.pop %v845
    %v850 = vmul.f32 %v827, %v846
    %v851 = vmul.f32 %v829, %v847
    %v852 = vmul.f32 %v831, %v848
    %v853 = vmul.f32 %v833, %v849
    %854 = vrot.lane.b32.xlu0 %v170, 80
    %v855 = vpop.permute.xlu0 %854
    %v858 = vsel %vm185, %v850, 0
    %860 = vmatpush.msra.mxu0 0.0
    %861 = vmatpush.msra.mxu0 0.0
    %862 = vmatpush.msra.mxu0 0.0
    %863 = vmatpush.msra.mxu0 0.0
    %864 = vmatpush.msra.mxu0 0.0
    %865 = vmatpush.msra.mxu0 0.0
    %866 = vmatpush.msra.mxu0 0.0
    %867 = vmatpush.msra.mxu0 0.0
    %868 = vmatpush.msra.mxu0 0.0
    %869 = vmatpush.msra.mxu0 0.0
    %870 = vmatpush.msra.mxu0 0.0
    %871 = vmatpush.msra.mxu0 0.0
    %872 = vmatpush.msra.mxu0 0.0
    %873 = vmatpush.msra.mxu0 0.0
    %874 = vmatpush.msra.mxu0 0.0
    %875 = vmatpush.msra.mxu0 %v855
    %876 = vmatmul.f32.gmra.mxu0 %v858
    %v877 = vpop.f32.mrf.mxu0
    %v878 = vadd.f32 0.0, %v877
    %879 = vdwg.mxu0
    %880 = vrot.lane.b32.xlu0 %v173, 80
    %v881 = vpop.permute.xlu0 %880
    %v884 = vsel %vm185, %v851, 0
    %886 = vmatpush.msra.mxu0 0.0
    %887 = vmatpush.msra.mxu0 0.0
    %888 = vmatpush.msra.mxu0 0.0
    %889 = vmatpush.msra.mxu0 0.0
    %890 = vmatpush.msra.mxu0 0.0
    %891 = vmatpush.msra.mxu0 0.0
    %892 = vmatpush.msra.mxu0 0.0
    %893 = vmatpush.msra.mxu0 0.0
    %894 = vmatpush.msra.mxu0 0.0
    %895 = vmatpush.msra.mxu0 0.0
    %896 = vmatpush.msra.mxu0 0.0
    %897 = vmatpush.msra.mxu0 0.0
    %898 = vmatpush.msra.mxu0 0.0
    %899 = vmatpush.msra.mxu0 0.0
    %900 = vmatpush.msra.mxu0 0.0
    %901 = vmatpush.msra.mxu0 %v881
    %902 = vmatmul.f32.gmra.mxu0 %v884
    %v903 = vpop.f32.mrf.mxu0
    %v904 = vadd.f32 0.0, %v903
    %905 = vdwg.mxu0
    %906 = vrot.lane.b32.xlu0 %v176, 80
    %v907 = vpop.permute.xlu0 %906
    %v910 = vsel %vm185, %v852, 0
    %912 = vmatpush.msra.mxu0 0.0
    %913 = vmatpush.msra.mxu0 0.0
    %914 = vmatpush.msra.mxu0 0.0
    %915 = vmatpush.msra.mxu0 0.0
    %916 = vmatpush.msra.mxu0 0.0
    %917 = vmatpush.msra.mxu0 0.0
    %918 = vmatpush.msra.mxu0 0.0
    %919 = vmatpush.msra.mxu0 0.0
    %920 = vmatpush.msra.mxu0 0.0
    %921 = vmatpush.msra.mxu0 0.0
    %922 = vmatpush.msra.mxu0 0.0
    %923 = vmatpush.msra.mxu0 0.0
    %924 = vmatpush.msra.mxu0 0.0
    %925 = vmatpush.msra.mxu0 0.0
    %926 = vmatpush.msra.mxu0 0.0
    %927 = vmatpush.msra.mxu0 %v907
    %928 = vmatmul.f32.gmra.mxu0 %v910
    %v929 = vpop.f32.mrf.mxu0
    %v930 = vadd.f32 0.0, %v929
    %931 = vdwg.mxu0
    %932 = vrot.lane.b32.xlu0 %v179, 80
    %v933 = vpop.permute.xlu0 %932
    %v936 = vsel %vm185, %v853, 0
    %938 = vmatpush.msra.mxu0 0.0
    %939 = vmatpush.msra.mxu0 0.0
    %940 = vmatpush.msra.mxu0 0.0
    %941 = vmatpush.msra.mxu0 0.0
    %942 = vmatpush.msra.mxu0 0.0
    %943 = vmatpush.msra.mxu0 0.0
    %944 = vmatpush.msra.mxu0 0.0
    %945 = vmatpush.msra.mxu0 0.0
    %946 = vmatpush.msra.mxu0 0.0
    %947 = vmatpush.msra.mxu0 0.0
    %948 = vmatpush.msra.mxu0 0.0
    %949 = vmatpush.msra.mxu0 0.0
    %950 = vmatpush.msra.mxu0 0.0
    %951 = vmatpush.msra.mxu0 0.0
    %952 = vmatpush.msra.mxu0 0.0
    %953 = vmatpush.msra.mxu0 %v933
    %954 = vmatmul.f32.gmra.mxu0 %v936
    %v955 = vpop.f32.mrf.mxu0
    %v956 = vadd.f32 0.0, %v955
    %957 = vdwg.mxu0
    %958 = vrot.lane.b32.xlu0 %v122, 104
    %v959 = vpop.permute.xlu0 %958
    %960 = vrot.lane.b32.xlu0 %v170, 104
    %v961 = vpop.permute.xlu0 %960
    %v962 = vsel %vm185, %v959, 0
    %v964 = vsel %vm185, %v961, 0
    %966 = vmatpush.xpose.msra.mxu0 0.0
    %967 = vmatpush.xpose.msra.mxu0 0.0
    %968 = vmatpush.xpose.msra.mxu0 0.0
    %969 = vmatpush.xpose.msra.mxu0 0.0
    %970 = vmatpush.xpose.msra.mxu0 0.0
    %971 = vmatpush.xpose.msra.mxu0 0.0
    %972 = vmatpush.xpose.msra.mxu0 0.0
    %973 = vmatpush.xpose.msra.mxu0 0.0
    %974 = vmatpush.xpose.msra.mxu0 0.0
    %975 = vmatpush.xpose.msra.mxu0 0.0
    %976 = vmatpush.xpose.msra.mxu0 0.0
    %977 = vmatpush.xpose.msra.mxu0 0.0
    %978 = vmatpush.xpose.msra.mxu0 0.0
    %979 = vmatpush.xpose.msra.mxu0 0.0
    %980 = vmatpush.xpose.msra.mxu0 0.0
    %981 = vmatpush.xpose.msra.mxu0 %v964
    %982 = vmatmul.f32.gmra.mxu0 %v962
    %v983 = vpop.f32.mrf.mxu0
    %v984 = vadd.f32 %v184, %v983
    %985 = vdwg.mxu0
    %986 = vrot.lane.b32.xlu0 %v125, 104
    %v987 = vpop.permute.xlu0 %986
    %988 = vrot.lane.b32.xlu0 %v173, 104
    %v989 = vpop.permute.xlu0 %988
    %v990 = vsel %vm185, %v987, 0
    %v992 = vsel %vm185, %v989, 0
    %994 = vmatpush.xpose.msra.mxu0 0.0
    %995 = vmatpush.xpose.msra.mxu0 0.0
    %996 = vmatpush.xpose.msra.mxu0 0.0
    %997 = vmatpush.xpose.msra.mxu0 0.0
    %998 = vmatpush.xpose.msra.mxu0 0.0
    %999 = vmatpush.xpose.msra.mxu0 0.0
    %1000 = vmatpush.xpose.msra.mxu0 0.0
    %1001 = vmatpush.xpose.msra.mxu0 0.0
    %1002 = vmatpush.xpose.msra.mxu0 0.0
    %1003 = vmatpush.xpose.msra.mxu0 0.0
    %1004 = vmatpush.xpose.msra.mxu0 0.0
    %1005 = vmatpush.xpose.msra.mxu0 0.0
    %1006 = vmatpush.xpose.msra.mxu0 0.0
    %1007 = vmatpush.xpose.msra.mxu0 0.0
    %1008 = vmatpush.xpose.msra.mxu0 0.0
    %1009 = vmatpush.xpose.msra.mxu0 %v992
    %1010 = vmatmul.f32.gmra.mxu0 %v990
    %v1011 = vpop.f32.mrf.mxu0
    %v1012 = vadd.f32 %v184, %v1011
    %1013 = vdwg.mxu0
    %1014 = vrot.lane.b32.xlu0 %v128, 104
    %v1015 = vpop.permute.xlu0 %1014
    %1016 = vrot.lane.b32.xlu0 %v176, 104
    %v1017 = vpop.permute.xlu0 %1016
    %v1018 = vsel %vm185, %v1015, 0
    %v1020 = vsel %vm185, %v1017, 0
    %1022 = vmatpush.xpose.msra.mxu0 0.0
    %1023 = vmatpush.xpose.msra.mxu0 0.0
    %1024 = vmatpush.xpose.msra.mxu0 0.0
    %1025 = vmatpush.xpose.msra.mxu0 0.0
    %1026 = vmatpush.xpose.msra.mxu0 0.0
    %1027 = vmatpush.xpose.msra.mxu0 0.0
    %1028 = vmatpush.xpose.msra.mxu0 0.0
    %1029 = vmatpush.xpose.msra.mxu0 0.0
    %1030 = vmatpush.xpose.msra.mxu0 0.0
    %1031 = vmatpush.xpose.msra.mxu0 0.0
    %1032 = vmatpush.xpose.msra.mxu0 0.0
    %1033 = vmatpush.xpose.msra.mxu0 0.0
    %1034 = vmatpush.xpose.msra.mxu0 0.0
    %1035 = vmatpush.xpose.msra.mxu0 0.0
    %1036 = vmatpush.xpose.msra.mxu0 0.0
    %1037 = vmatpush.xpose.msra.mxu0 %v1020
    %1038 = vmatmul.f32.gmra.mxu0 %v1018
    %v1039 = vpop.f32.mrf.mxu0
    %v1040 = vadd.f32 %v184, %v1039
    %1041 = vdwg.mxu0
    %1042 = vrot.lane.b32.xlu0 %v131, 104
    %v1043 = vpop.permute.xlu0 %1042
    %1044 = vrot.lane.b32.xlu0 %v179, 104
    %v1045 = vpop.permute.xlu0 %1044
    %v1046 = vsel %vm185, %v1043, 0
    %v1048 = vsel %vm185, %v1045, 0
    %1050 = vmatpush.xpose.msra.mxu0 0.0
    %1051 = vmatpush.xpose.msra.mxu0 0.0
    %1052 = vmatpush.xpose.msra.mxu0 0.0
    %1053 = vmatpush.xpose.msra.mxu0 0.0
    %1054 = vmatpush.xpose.msra.mxu0 0.0
    %1055 = vmatpush.xpose.msra.mxu0 0.0
    %1056 = vmatpush.xpose.msra.mxu0 0.0
    %1057 = vmatpush.xpose.msra.mxu0 0.0
    %1058 = vmatpush.xpose.msra.mxu0 0.0
    %1059 = vmatpush.xpose.msra.mxu0 0.0
    %1060 = vmatpush.xpose.msra.mxu0 0.0
    %1061 = vmatpush.xpose.msra.mxu0 0.0
    %1062 = vmatpush.xpose.msra.mxu0 0.0
    %1063 = vmatpush.xpose.msra.mxu0 0.0
    %1064 = vmatpush.xpose.msra.mxu0 0.0
    %1065 = vmatpush.xpose.msra.mxu0 %v1048
    %1066 = vmatmul.f32.gmra.mxu0 %v1046
    %v1067 = vpop.f32.mrf.mxu0
    %v1068 = vadd.f32 %v184, %v1067
    %1069 = vdwg.mxu0
    %v1070 = vsel %vm185, %v984, -inf
    %1071 = vmax.xlane.f32.xlu0 %v1070
    %v1072 = vpop.xlane.xlu0 %1071
    %v1073 = vsel %vm185, %v1012, -inf
    %1074 = vmax.xlane.f32.xlu0 %v1073
    %v1075 = vpop.xlane.xlu0 %1074
    %v1076 = vsel %vm185, %v1040, -inf
    %1077 = vmax.xlane.f32.xlu0 %v1076
    %v1078 = vpop.xlane.xlu0 %1077
    %v1079 = vsel %vm185, %v1068, -inf
    %1080 = vmax.xlane.f32.xlu0 %v1079
    %v1081 = vpop.xlane.xlu0 %1080
    %v1082 = vsub.f32 %v984, %v1072
    %v1083 = vsub.f32 %v1012, %v1075
    %v1084 = vsub.f32 %v1040, %v1078
    %v1085 = vsub.f32 %v1068, %v1081
    %v1086 = vmul.f32 %v1082, 1.442695
    %v1087 = vpow.pop %v1086
    %v1088 = vmul.f32 %v1083, 1.442695
    %v1089 = vpow.pop %v1088
    %v1090 = vmul.f32 %v1084, 1.442695
    %v1091 = vpow.pop %v1090
    %v1092 = vmul.f32 %v1085, 1.442695
    %v1093 = vpow.pop %v1092
    %v1094 = vsel %vm185, %v1087, 0.0
    %1095 = vadd.xlane.f32.xlu0 %v1094
    %v1096 = vpop.xlane.xlu0 %1095
    %v1097 = vsel %vm185, %v1089, 0.0
    %1098 = vadd.xlane.f32.xlu0 %v1097
    %v1099 = vpop.xlane.xlu0 %1098
    %v1100 = vsel %vm185, %v1091, 0.0
    %1101 = vadd.xlane.f32.xlu0 %v1100
    %v1102 = vpop.xlane.xlu0 %1101
    %v1103 = vsel %vm185, %v1093, 0.0
    %1104 = vadd.xlane.f32.xlu0 %v1103
    %v1105 = vpop.xlane.xlu0 %1104
    %v1106 = vrcp.pop %v1096
    %v1107 = vrcp.pop %v1099
    %v1108 = vrcp.pop %v1102
    %v1109 = vrcp.pop %v1105
    %v1110 = vmul.f32 %v1087, %v1106
    %v1111 = vmul.f32 %v1089, %v1107
    %v1112 = vmul.f32 %v1091, %v1108
    %v1113 = vmul.f32 %v1093, %v1109
    %1114 = vrot.lane.b32.xlu0 %v170, 72
    %v1115 = vpop.permute.xlu0 %1114
    %v1118 = vsel %vm185, %v1110, 0
    %1120 = vmatpush.msra.mxu0 0.0
    %1121 = vmatpush.msra.mxu0 0.0
    %1122 = vmatpush.msra.mxu0 0.0
    %1123 = vmatpush.msra.mxu0 0.0
    %1124 = vmatpush.msra.mxu0 0.0
    %1125 = vmatpush.msra.mxu0 0.0
    %1126 = vmatpush.msra.mxu0 0.0
    %1127 = vmatpush.msra.mxu0 0.0
    %1128 = vmatpush.msra.mxu0 0.0
    %1129 = vmatpush.msra.mxu0 0.0
    %1130 = vmatpush.msra.mxu0 0.0
    %1131 = vmatpush.msra.mxu0 0.0
    %1132 = vmatpush.msra.mxu0 0.0
    %1133 = vmatpush.msra.mxu0 0.0
    %1134 = vmatpush.msra.mxu0 0.0
    %1135 = vmatpush.msra.mxu0 %v1115
    %1136 = vmatmul.f32.gmra.mxu0 %v1118
    %v1137 = vpop.f32.mrf.mxu0
    %v1138 = vadd.f32 0.0, %v1137
    %1139 = vdwg.mxu0
    %1140 = vrot.lane.b32.xlu0 %v173, 72
    %v1141 = vpop.permute.xlu0 %1140
    %v1144 = vsel %vm185, %v1111, 0
    %1146 = vmatpush.msra.mxu0 0.0
    %1147 = vmatpush.msra.mxu0 0.0
    %1148 = vmatpush.msra.mxu0 0.0
    %1149 = vmatpush.msra.mxu0 0.0
    %1150 = vmatpush.msra.mxu0 0.0
    %1151 = vmatpush.msra.mxu0 0.0
    %1152 = vmatpush.msra.mxu0 0.0
    %1153 = vmatpush.msra.mxu0 0.0
    %1154 = vmatpush.msra.mxu0 0.0
    %1155 = vmatpush.msra.mxu0 0.0
    %1156 = vmatpush.msra.mxu0 0.0
    %1157 = vmatpush.msra.mxu0 0.0
    %1158 = vmatpush.msra.mxu0 0.0
    %1159 = vmatpush.msra.mxu0 0.0
    %1160 = vmatpush.msra.mxu0 0.0
    %1161 = vmatpush.msra.mxu0 %v1141
    %1162 = vmatmul.f32.gmra.mxu0 %v1144
    %v1163 = vpop.f32.mrf.mxu0
    %v1164 = vadd.f32 0.0, %v1163
    %1165 = vdwg.mxu0
    %1166 = vrot.lane.b32.xlu0 %v176, 72
    %v1167 = vpop.permute.xlu0 %1166
    %v1170 = vsel %vm185, %v1112, 0
    %1172 = vmatpush.msra.mxu0 0.0
    %1173 = vmatpush.msra.mxu0 0.0
    %1174 = vmatpush.msra.mxu0 0.0
    %1175 = vmatpush.msra.mxu0 0.0
    %1176 = vmatpush.msra.mxu0 0.0
    %1177 = vmatpush.msra.mxu0 0.0
    %1178 = vmatpush.msra.mxu0 0.0
    %1179 = vmatpush.msra.mxu0 0.0
    %1180 = vmatpush.msra.mxu0 0.0
    %1181 = vmatpush.msra.mxu0 0.0
    %1182 = vmatpush.msra.mxu0 0.0
    %1183 = vmatpush.msra.mxu0 0.0
    %1184 = vmatpush.msra.mxu0 0.0
    %1185 = vmatpush.msra.mxu0 0.0
    %1186 = vmatpush.msra.mxu0 0.0
    %1187 = vmatpush.msra.mxu0 %v1167
    %1188 = vmatmul.f32.gmra.mxu0 %v1170
    %v1189 = vpop.f32.mrf.mxu0
    %v1190 = vadd.f32 0.0, %v1189
    %1191 = vdwg.mxu0
    %1192 = vrot.lane.b32.xlu0 %v179, 72
    %v1193 = vpop.permute.xlu0 %1192
    %v1196 = vsel %vm185, %v1113, 0
    %1198 = vmatpush.msra.mxu0 0.0
    %1199 = vmatpush.msra.mxu0 0.0
    %1200 = vmatpush.msra.mxu0 0.0
    %1201 = vmatpush.msra.mxu0 0.0
    %1202 = vmatpush.msra.mxu0 0.0
    %1203 = vmatpush.msra.mxu0 0.0
    %1204 = vmatpush.msra.mxu0 0.0
    %1205 = vmatpush.msra.mxu0 0.0
    %1206 = vmatpush.msra.mxu0 0.0
    %1207 = vmatpush.msra.mxu0 0.0
    %1208 = vmatpush.msra.mxu0 0.0
    %1209 = vmatpush.msra.mxu0 0.0
    %1210 = vmatpush.msra.mxu0 0.0
    %1211 = vmatpush.msra.mxu0 0.0
    %1212 = vmatpush.msra.mxu0 0.0
    %1213 = vmatpush.msra.mxu0 %v1193
    %1214 = vmatmul.f32.gmra.mxu0 %v1196
    %v1215 = vpop.f32.mrf.mxu0
    %v1216 = vadd.f32 0.0, %v1215
    %1217 = vdwg.mxu0
    %1222 = vrot.lane.b32.xlu0 %v618, 8
    %v1223 = vpop.permute.xlu0 %1222
    %1224 = vrot.lane.b32.xlu0 %v644, 8
    %v1225 = vpop.permute.xlu0 %1224
    %1226 = vrot.lane.b32.xlu0 %v670, 8
    %v1227 = vpop.permute.xlu0 %1226
    %1228 = vrot.lane.b32.xlu0 %v696, 8
    %v1229 = vpop.permute.xlu0 %1228
    %1238 = vrot.lane.b32.xlu0 %v878, 16
    %v1239 = vpop.permute.xlu0 %1238
    %1240 = vrot.lane.b32.xlu0 %v904, 16
    %v1241 = vpop.permute.xlu0 %1240
    %1242 = vrot.lane.b32.xlu0 %v930, 16
    %v1243 = vpop.permute.xlu0 %1242
    %1244 = vrot.lane.b32.xlu0 %v956, 16
    %v1245 = vpop.permute.xlu0 %1244
    %1254 = vrot.lane.b32.xlu0 %v1138, 24
    %v1255 = vpop.permute.xlu0 %1254
    %1256 = vrot.lane.b32.xlu0 %v1164, 24
    %v1257 = vpop.permute.xlu0 %1256
    %1258 = vrot.lane.b32.xlu0 %v1190, 24
    %v1259 = vpop.permute.xlu0 %1258
    %1260 = vrot.lane.b32.xlu0 %v1216, 24
    %v1261 = vpop.permute.xlu0 %1260
    %v1266 = vsel %vm185, %v358, %v1223
    %v1267 = vsel %vm185, %v384, %v1225
    %v1268 = vsel %vm185, %v410, %v1227
    %v1269 = vsel %vm185, %v436, %v1229
    %v1270 = vsel %vm91, %v1266, %v1239
    %v1271 = vsel %vm91, %v1267, %v1241
    %v1272 = vsel %vm91, %v1268, %v1243
    %v1273 = vsel %vm91, %v1269, %v1245
    %vm1274 = vcmask 195584
    %v1275 = vsel %vm1274, %v1270, %v1255
    %v1276 = vsel %vm1274, %v1271, %v1257
    %v1277 = vsel %vm1274, %v1272, %v1259
    %v1278 = vsel %vm1274, %v1273, %v1261
    %vm1279 = vcmask 261120
    %1280 = vst.msk [vmem:[#allocation10] sm:$0xff] %vm1279, %v1275
    %1281 = vst.msk [vmem:[#allocation10 + $0x8] sm:$0xff] %vm1279, %v1276
    %1282 = vst.msk [vmem:[#allocation10 + $0x10] sm:$0xff] %vm1279, %v1277
    %1283 = vst.msk [vmem:[#allocation10 + $0x18] sm:$0xff] %vm1279, %v1278
    // Predicated region
    $region34: #{tpu_custom_call.1} parent=1 // pred_check
      _
    $region35: #{tpu_custom_call.1} parent=1 // pred_check_branch
      %1285 = sbr.rel (0) target = $region37
    $region36: #{tpu_custom_call.1} parent=1 // pred_region
      %1287 = vsyncadd [#allocation4], 0
      %s1288 = sshll.u32 [#allocation10], 4
      %s1289 = int_to_ptr.vmem [resolvable:$true] %s1288
      %s1290 = sshll.u32 %s4, 4
      %s1291 = int_to_ptr.hbm [resolvable:$true] %s1290
      %1296 = dma.vmem_to_hbm [thread:$0]  %s1289, 512, %s1291, [#allocation4], 128, 128, 8
    $region37: #{tpu_custom_call.1} parent=1 // pred_fallthru
      _
    // Predicated region
    $region38: #{tpu_custom_call.1} parent=1 // pred_check
      _
    $region39: #{tpu_custom_call.1} parent=1 // pred_check_branch
      %1298 = sbr.rel (0) target = $region41
    $region40: #{tpu_custom_call.1} parent=1 // pred_region
      %1300 = dma.done [#allocation4], 512
    $region41: #{tpu_custom_call.1} parent=1 // pred_fallthru
      _
    %1301 = vsyncpa [#allocation3], 1
    %1302 = vsyncpa [#allocation6], 1
    %1303 = vsyncpa [#allocation9], 1
    %1304 = vsyncpa [#allocation4], 1

</llo_original>
